<compile_context>
chip_gen: v7x
topology: tpu7x:2x2x1
jax: 0.10.0
libtpu: 0.0.40
codegen_flags: <defaults>
</compile_context>

<pallas_src>
import jax
import jax.numpy as jnp
import numpy as np
from jax import lax
from jax.experimental import pallas as pl
from jax.experimental.pallas import tpu as pltpu

LANE = 128
NEG_BIG = -1e30


def _round_up(x, m):
    return (x + m - 1) // m * m


def _build_kernel(H, I, O, S):
    """Kernel factory: bakes the packed-lane offsets as Python constants."""
    H_pad = _round_up(H, LANE)
    I_pad = _round_up(I, LANE)
    O_pad = _round_up(O, LANE)
    S_pad = _round_up(S, LANE)
    G_OFF = H_pad                # gate segment offset (hx_proj cols / weight cols / bias)
    G_W = 4 * H_pad              # four gates, each padded to its own 128-lane segment
    OUT_OFF = G_OFF + G_W        # W_out^T / b_out offset
    V_OFF = OUT_OFF + O_pad      # attention scoring vector offset (bias slab)
    X_OFF = H_pad                # x slot inside the carried [h | x | c] scratch
    C_OFF = H_pad + I_pad        # c slot
    LEN_OFF = 2 * H_pad          # lengths lane inside the initial-state slab

    def kernel(x_ref, enc_ref, st_ref, w_hx_ref, w_h_ref, b_ref,
               out_ref, hc_ref, penc_ref):
        t = pl.program_id(0)
        B = hc_ref.shape[0]

        # ---- step 0: load carried state + step-invariant encoder projection ----
        @pl.when(t == 0)
        def _():
            hc_ref[:, 0:H_pad] = st_ref[:, 0:H_pad]                      # h0 (zero-padded)
            hc_ref[:, C_OFF:C_OFF + H_pad] = st_ref[:, H_pad:2 * H_pad]  # c0 (zero-padded)
            enc2d = enc_ref[...].reshape(B * S, H)
            penc_ref[...] = jnp.dot(
                enc2d, w_h_ref[0:H, 0:H],
                preferred_element_type=jnp.float32).reshape(B, S, H)

        # place this step's input right next to h -> [h | x] needs no lane concatenate
        hc_ref[:, X_OFF:X_OFF + I_pad] = x_ref[0]
        hx = hc_ref[:, 0:H_pad + I_pad]                       # (B, H_pad + I_pad)
        c_prev = hc_ref[:, C_OFF:C_OFF + H_pad]               # (B, H_pad)

        # one fused matmul: [h|x] @ [W_att_prev^T | W_hh^T & W_ih_x^T (gate-scattered)]
        hx_proj = jnp.dot(hx, w_hx_ref[...], preferred_element_type=jnp.float32)
        proj_prev = hx_proj[:, 0:H]                           # attention prev-hidden proj
        gates_hx = hx_proj[:, G_OFF:G_OFF + G_W]              # h & x gate contributions

        # ------------------- attention mechanism -------------------
        b_att = b_ref[:, 0:H]
        v = b_ref[:, V_OFF:V_OFF + H]
        ua = jnp.tanh(penc_ref[...] + (proj_prev + b_att)[:, None, :])   # (B, S, H)
        scores = jnp.sum(ua * v[:, None, :], axis=-1)                    # (B, S)
        seq_ids = lax.broadcasted_iota(jnp.int32, (B, S), 1)
        lens = st_ref[:, LEN_OFF:LEN_OFF + 1].astype(jnp.int32)          # (B, 1)
        scores = jnp.where(seq_ids < lens, scores, -jnp.inf)
        m = jnp.max(scores, axis=-1, keepdims=True)
        e = jnp.exp(scores - m)
        attw = e * pl.reciprocal(jnp.sum(e, axis=-1, keepdims=True), approx=True)
        # context on the MXU: (B,1,S) x (B,S,H) -> (B,H)
        context = jnp.einsum('bqs,bsh->bqh', attw[:, None, :], enc_ref[...],
                             preferred_element_type=jnp.float32)[:, 0, :]

        # ------------------- LSTM cell (gate segments 128-lane aligned) ----------
        gates = (gates_hx
                 + jnp.dot(context, w_h_ref[0:H, G_OFF:G_OFF + G_W],
                           preferred_element_type=jnp.float32)
                 + b_ref[:, G_OFF:G_OFF + G_W])               # PyTorch order i, f, g, o
        i_g = jax.nn.sigmoid(gates[:, 0:H_pad])
        f_g = jax.nn.sigmoid(gates[:, H_pad:2 * H_pad])
        g_g = jnp.tanh(gates[:, 2 * H_pad:3 * H_pad])
        o_g = jax.nn.sigmoid(gates[:, 3 * H_pad:4 * H_pad])
        c_new = f_g * c_prev + i_g * g_g                      # padded lanes stay exactly 0
        h_new = o_g * jnp.tanh(c_new)

        hc_ref[:, 0:H_pad] = h_new                            # carry to next decode step
        hc_ref[:, C_OFF:C_OFF + H_pad] = c_new

        # ------------------- output projection + LogSoftmax(dim=1) ---------------
        logits = (jnp.dot(h_new, w_h_ref[:, OUT_OFF:OUT_OFF + O_pad],
                          preferred_element_type=jnp.float32)
                  + b_ref[:, OUT_OFF:OUT_OFF + O_pad])        # padded lanes ~= -1e30
        lm = jnp.max(logits, axis=-1, keepdims=True)
        lse = jnp.log(jnp.sum(jnp.exp(logits - lm), axis=-1, keepdims=True)) + lm
        logprob = logits - lse

        # lane-dense per-step output slab: [logprob | h | c | attw | pad]
        pieces = [logprob, h_new, c_new, attw]
        if S_pad > S:
            pieces.append(jnp.zeros((B, S_pad - S), jnp.float32))
        out_ref[0] = jnp.concatenate(pieces, axis=-1)

    return kernel


def prepare_params(params):
    """One-time weight/bias packing (do NOT call per decode step).

    Column layout (all offsets are round_up(.,128) aligned, valid for any H):
      w_hx (H_pad+I_pad, H_pad+4*H_pad): rows[h | x] x cols[W_att_prev^T | gate segs]
      w_h  (H_pad, H_pad+4*H_pad+O_pad): rows[h-dim] x cols[W_att_enc^T | ctx gate segs | W_out^T]
      b    (1, H_pad+4*H_pad+O_pad+H_pad): [b_att | b_lstm(gate segs) | b_out(+ -1e30 pad) | att_v]
    """
    f32 = jnp.float32
    H = params["w_hh"].shape[1]
    I = params["w_ih"].shape[1] - H
    O = params["w_out"].shape[0]
    H_pad = _round_up(H, LANE)
    I_pad = _round_up(I, LANE)
    O_pad = _round_up(O, LANE)
    G_OFF = H_pad
    G_W = 4 * H_pad
    OUT_OFF = G_OFF + G_W
    V_OFF = OUT_OFF + O_pad

    w_hh_t = params["w_hh"].T.astype(f32)        # (H, 4H)
    w_ih_t = params["w_ih"].T.astype(f32)        # (I+H, 4H): rows [0:I]=x, [I:I+H]=context

    w_hx = jnp.zeros((H_pad + I_pad, G_OFF + G_W), f32)
    w_hx = w_hx.at[0:H, 0:H].set(params["w_att_prev"].T.astype(f32))
    w_h = jnp.zeros((H_pad, OUT_OFF + O_pad), f32)
    w_h = w_h.at[0:H, 0:H].set(params["w_att_enc"].T.astype(f32))
    w_h = w_h.at[0:H, OUT_OFF:OUT_OFF + O].set(params["w_out"].T.astype(f32))

    b = jnp.zeros((1, V_OFF + H_pad), f32)
    b = b.at[0, 0:H].set((params["b_att_enc"] + params["b_att_prev"]).astype(f32))
    b = b.at[0, OUT_OFF:OUT_OFF + O_pad].set(NEG_BIG)   # padded logits -> exp() == 0
    b = b.at[0, OUT_OFF:OUT_OFF + O].set(params["b_out"].astype(f32))
    b = b.at[0, V_OFF:V_OFF + H].set(params["att_v"].reshape(-1).astype(f32))

    b_lstm = (params["b_ih"] + params["b_hh"]).astype(f32)
    for k in range(4):                                   # scatter per-gate to 128 boundaries
        col = G_OFF + k * H_pad
        w_hx = w_hx.at[0:H, col:col + H].set(w_hh_t[:, k * H:(k + 1) * H])
        w_hx = w_hx.at[H_pad:H_pad + I, col:col + H].set(w_ih_t[0:I, k * H:(k + 1) * H])
        w_h = w_h.at[0:H, col:col + H].set(w_ih_t[I:I + H, k * H:(k + 1) * H])
        b = b.at[0, col:col + H].set(b_lstm[k * H:(k + 1) * H])

    return {"H": H, "I": I, "O": O, "w_hx": w_hx, "w_h": w_h, "b": b}


def decoder_forward_fused(to_predict_seq, hidden, encoder_outputs, lengths, pp):
    """T decode steps in ONE pallas_call. to_predict_seq: (T, B, I); hidden=(h,c) (1,B,H).
    Returns (logprob (T,B,O), final hidden, attention weights (T,B,S))."""
    h0, c0 = hidden
    T, B, I = to_predict_seq.shape
    _, S, H = encoder_outputs.shape
    O = pp["O"]
    f32 = jnp.float32
    H_pad = _round_up(H, LANE)
    I_pad = _round_up(I, LANE)
    O_pad = _round_up(O, LANE)
    S_pad = _round_up(S, LANE)
    OW = O_pad + 2 * H_pad + S_pad                       # output slab width (lane-dense)
    SW = 2 * H_pad + LANE                                # state slab width

    # pack per-call activations into lane-aligned slabs (operand collapse)
    x_seq = jnp.zeros((T, B, I_pad), f32).at[:, :, 0:I].set(to_predict_seq.astype(f32))
    state = jnp.zeros((B, SW), f32)
    state = state.at[:, 0:H].set(h0[0].astype(f32))
    state = state.at[:, H_pad:H_pad + H].set(c0[0].astype(f32))
    state = state.at[:, 2 * H_pad].set(lengths.astype(f32))
    enc = encoder_outputs.astype(f32)

    operands = (x_seq, enc, state, pp["w_hx"], pp["w_h"], pp["b"])
    total_bytes = sum(int(np.prod(a.shape)) * 4 for a in operands) + T * B * OW * 4
    vmem_limit = int(min(48 * 2**20, max(8 * 2**20, 3 * total_bytes)))

    kernel = _build_kernel(H, I, O, S)
    slab = pl.pallas_call(
        kernel,
        out_shape=jax.ShapeDtypeStruct((T, B, OW), f32),
        grid=(T,),
        in_specs=[
            pl.BlockSpec((1, B, I_pad), lambda t: (t, 0, 0)),      # streamed per step
            pl.BlockSpec((B, S, H), lambda t: (0, 0, 0)),          # VMEM-resident
            pl.BlockSpec((B, SW), lambda t: (0, 0)),               # VMEM-resident
            pl.BlockSpec(pp["w_hx"].shape, lambda t: (0, 0)),      # VMEM-resident weights
            pl.BlockSpec(pp["w_h"].shape, lambda t: (0, 0)),       # VMEM-resident weights
            pl.BlockSpec(pp["b"].shape, lambda t: (0, 0)),         # VMEM-resident biases
        ],
        out_specs=pl.BlockSpec((1, B, OW), lambda t: (t, 0, 0)),
        scratch_shapes=[
            pltpu.VMEM((B, 2 * H_pad + I_pad), f32),   # carried [h | x | c]
            pltpu.VMEM((B, S, H), f32),                # step-invariant enc projection
        ],
        compiler_params=pltpu.CompilerParams(
            dimension_semantics=("arbitrary",),        # sequential h/c carry across steps
            vmem_limit_bytes=vmem_limit),
    )(*operands)

    logprob = slab[:, :, 0:O]                                       # (T, B, O)
    h_seq = slab[:, :, O_pad:O_pad + H]                             # (T, B, H)
    c_seq = slab[:, :, O_pad + H_pad:O_pad + H_pad + H]             # (T, B, H)
    attw = slab[:, :, O_pad + 2 * H_pad:O_pad + 2 * H_pad + S]      # (T, B, S)
    hidden_out = (h_seq[-1][None], c_seq[-1][None])                 # (1, B, H) each
    return logprob, hidden_out, attw


def decoder_forward(to_predict, hidden, encoder_outputs, lengths, pp):
    """PyTorch-shaped single-step interface: to_predict (1,B,I), hidden=(h,c) each (1,B,H),
    encoder_outputs (B,S,H), lengths (B,). Runs the fused kernel with T=1."""
    logprob, hidden_out, attw = decoder_forward_fused(
        to_predict, hidden, encoder_outputs, lengths, pp)
    return logprob[0], hidden_out, attw[0][:, None, :]


def decoder_ref(to_predict, hidden, enc, lengths, p):
    """Pure-JAX reference replicating the PyTorch module math (single step)."""
    h0, c0 = hidden
    B, S, H = enc.shape
    ua = jnp.tanh(enc @ p["w_att_enc"].T + p["b_att_enc"]
                  + (jnp.swapaxes(h0, 0, 1) @ p["w_att_prev"].T + p["b_att_prev"]))
    scores = jnp.einsum('h,bsh->bs', p["att_v"][0], ua)
    mask = jnp.arange(S)[None, :] < lengths[:, None]
    scores = jnp.where(mask, scores, -jnp.inf)
    attw = jax.nn.softmax(scores, axis=-1)
    context = jnp.einsum('bs,bsh->bh', attw, enc)
    x = jnp.concatenate([to_predict[0].astype(jnp.float32), context], axis=-1)
    gates = x @ p["w_ih"].T + h0[0] @ p["w_hh"].T + p["b_ih"] + p["b_hh"]
    i_g = jax.nn.sigmoid(gates[:, :H]); f_g = jax.nn.sigmoid(gates[:, H:2 * H])
    g_g = jnp.tanh(gates[:, 2 * H:3 * H]); o_g = jax.nn.sigmoid(gates[:, 3 * H:])
    c1 = f_g * c0[0] + i_g * g_g
    h1 = o_g * jnp.tanh(c1)
    logits = h1 @ p["w_out"].T + p["b_out"]
    return jax.nn.log_softmax(logits, axis=-1), (h1[None], c1[None]), attw[:, None, :]


if __name__ == "__main__":
    # Small shapes consistent with Decoder(input_size=16, hidden_size=32,
    # num_layers=1, output_size=8, attention_mechanism=True); T decode steps.
    B, S, H, I, O, T = 2, 8, 32, 16, 8, 4
    key = jax.random.PRNGKey(0)
    ks = jax.random.split(key, 16)

    params = {
        "w_att_enc":  0.1 * jax.random.normal(ks[0], (H, H), jnp.float32),
        "b_att_enc":  0.1 * jax.random.normal(ks[1], (H,), jnp.float32),
        "w_att_prev": 0.1 * jax.random.normal(ks[2], (H, H), jnp.float32),
        "b_att_prev": 0.1 * jax.random.normal(ks[3], (H,), jnp.float32),
        "att_v":      jnp.ones((1, H), jnp.float32),      # nn.Parameter(torch.ones(1, H))
        "w_ih":       0.1 * jax.random.normal(ks[4], (4 * H, I + H), jnp.float32),
        "w_hh":       0.1 * jax.random.normal(ks[5], (4 * H, H), jnp.float32),
        "b_ih":       0.1 * jax.random.normal(ks[6], (4 * H,), jnp.float32),
        "b_hh":       0.1 * jax.random.normal(ks[7], (4 * H,), jnp.float32),
        "w_out":      0.1 * jax.random.normal(ks[8], (O, H), jnp.float32),
        "b_out":      0.1 * jax.random.normal(ks[9], (O,), jnp.float32),
    }

    to_predict_seq = jax.random.normal(ks[10], (T, B, I), jnp.float32)
    h0 = jax.random.normal(ks[11], (1, B, H), jnp.float32)
    c0 = jax.random.normal(ks[12], (1, B, H), jnp.float32)
    encoder_outputs = jax.random.normal(ks[13], (B, S, H), jnp.float32)
    lengths = jnp.array([S, 5], jnp.int32)     # max(lengths) == S, as the module assumes

    prepped = prepare_params(params)           # one-time packing, not per decode step

    # ---- single step: exactly the module's forward ----
    logprob, (h1, c1), attw = decoder_forward(to_predict_seq[0:1], (h0, c0),
                                              encoder_outputs, lengths, prepped)
    jax.block_until_ready((logprob, h1, c1, attw))
    lp_r, (h1_r, c1_r), attw_r = decoder_ref(to_predict_seq[0:1], (h0, c0),
                                             encoder_outputs, lengths, params)
    np.testing.assert_allclose(np.asarray(logprob), np.asarray(lp_r), rtol=2e-2, atol=2e-2)
    np.testing.assert_allclose(np.asarray(h1), np.asarray(h1_r), rtol=2e-2, atol=2e-2)
    np.testing.assert_allclose(np.asarray(c1), np.asarray(c1_r), rtol=2e-2, atol=2e-2)
    np.testing.assert_allclose(np.asarray(attw), np.asarray(attw_r), rtol=2e-2, atol=2e-2)

    # ---- fused T-step decode: one pallas_call, weights resident, h/c carried in VMEM ----
    lp_seq, (hT, cT), attw_seq = decoder_forward_fused(to_predict_seq, (h0, c0),
                                                       encoder_outputs, lengths, prepped)
    jax.block_until_ready((lp_seq, hT, cT, attw_seq))
    hid = (h0, c0); lps, atts = [], []
    for t in range(T):
        lp_t, hid, att_t = decoder_ref(to_predict_seq[t:t + 1], hid,
                                       encoder_outputs, lengths, params)
        lps.append(np.asarray(lp_t)); atts.append(np.asarray(att_t[:, 0, :]))
    np.testing.assert_allclose(np.asarray(lp_seq), np.stack(lps), rtol=2e-2, atol=2e-2)
    np.testing.assert_allclose(np.asarray(attw_seq), np.stack(atts), rtol=2e-2, atol=2e-2)
    np.testing.assert_allclose(np.asarray(hT), np.asarray(hid[0]), rtol=2e-2, atol=2e-2)
    np.testing.assert_allclose(np.asarray(cT), np.asarray(hid[1]), rtol=2e-2, atol=2e-2)

    print("KERNEL_OK")
</pallas_src>

<mosaic_0001>
module attributes {stable_mosaic.version = 11 : i64} {
  func.func @kernel(%arg0: i32, %arg1: memref<1x2x128xf32, #tpu.memory_space<vmem>>, %arg2: memref<2x8x32xf32, #tpu.memory_space<vmem>>, %arg3: memref<2x384xf32, #tpu.memory_space<vmem>>, %arg4: memref<256x640xf32, #tpu.memory_space<vmem>>, %arg5: memref<128x768xf32, #tpu.memory_space<vmem>>, %arg6: memref<1x896xf32, #tpu.memory_space<vmem>>, %arg7: memref<1x2x512xf32, #tpu.memory_space<vmem>>, %arg8: memref<2x384xf32, #tpu.memory_space<vmem>>, %arg9: memref<2x8x32xf32, #tpu.memory_space<vmem>>) attributes {dimension_semantics = [#tpu.dimension_semantics<arbitrary>], iteration_bounds = array<i64: 1>, scalar_prefetch = 0 : i64, scratch_operands = 2 : i64, tpu.core_type = #tpu.core_type<tc>, window_params = [{transform_indices = @transform_0, window_bounds = array<i64: 1, 2, 128>}, {pipeline_mode = #tpu.pipeline_mode<synchronous>, transform_indices = @transform_1, window_bounds = array<i64: 2, 8, 32>}, {pipeline_mode = #tpu.pipeline_mode<synchronous>, transform_indices = @transform_2, window_bounds = array<i64: 2, 384>}, {pipeline_mode = #tpu.pipeline_mode<synchronous>, transform_indices = @transform_3, window_bounds = array<i64: 256, 640>}, {pipeline_mode = #tpu.pipeline_mode<synchronous>, transform_indices = @transform_4, window_bounds = array<i64: 128, 768>}, {pipeline_mode = #tpu.pipeline_mode<synchronous>, transform_indices = @transform_5, window_bounds = array<i64: 1, 896>}, {transform_indices = @transform_6, window_bounds = array<i64: 1, 2, 512>}]} {
    %c0_i32 = arith.constant 0 : i32
    %0 = arith.cmpi eq, %arg0, %c0_i32 : i32
    %1 = arith.extui %0 : i1 to i32
    %c0_i32_0 = arith.constant 0 : i32
    %2 = arith.cmpi ne, %1, %c0_i32_0 : i32
    scf.if %2 {
      %c0_47 = arith.constant 0 : index
      %c0_48 = arith.constant 0 : index
      %100 = vector.load %arg3[%c0_47, %c0_48] : memref<2x384xf32, #tpu.memory_space<vmem>>, vector<2x128xf32>
      %c0_49 = arith.constant 0 : index
      %c0_50 = arith.constant 0 : index
      %101 = vector.load %arg8[%c0_49, %c0_50] : memref<2x384xf32, #tpu.memory_space<vmem>>, vector<2x128xf32>
      tpu.vector_store %arg8[%c0_49, %c0_50], %100 {strides = array<i32>} : memref<2x384xf32, #tpu.memory_space<vmem>>, vector<2x128xf32>,
      %c0_51 = arith.constant 0 : index
      %c128_52 = arith.constant 128 : index
      %102 = vector.load %arg3[%c0_51, %c128_52] : memref<2x384xf32, #tpu.memory_space<vmem>>, vector<2x128xf32>
      %c0_53 = arith.constant 0 : index
      %c256_54 = arith.constant 256 : index
      %103 = vector.load %arg8[%c0_53, %c256_54] : memref<2x384xf32, #tpu.memory_space<vmem>>, vector<2x128xf32>
      tpu.vector_store %arg8[%c0_53, %c256_54], %102 {strides = array<i32>} : memref<2x384xf32, #tpu.memory_space<vmem>>, vector<2x128xf32>,
      %c0_55 = arith.constant 0 : index
      %c0_56 = arith.constant 0 : index
      %c0_57 = arith.constant 0 : index
      %104 = vector.load %arg2[%c0_55, %c0_56, %c0_57] : memref<2x8x32xf32, #tpu.memory_space<vmem>>, vector<2x8x32xf32>
      %105 = vector.shape_cast %104 : vector<2x8x32xf32> to vector<16x32xf32>
      %c0_58 = arith.constant 0 : index
      %c0_59 = arith.constant 0 : index
      %106 = vector.load %arg5[%c0_58, %c0_59] : memref<128x768xf32, #tpu.memory_space<vmem>>, vector<32x32xf32>
      %cst_60 = arith.constant dense<0.000000e+00> : vector<16x32xf32>
      %107 = tpu.matmul %105, %106, %cst_60 {dimension_numbers = #tpu.dot_dimension_numbers<[1], [0], [0], [1], [0, 0, 1, 1], [], []>} : vector<16x32xf32>, vector<32x32xf32>, vector<16x32xf32> -> vector<16x32xf32>
      %108 = vector.shape_cast %107 : vector<16x32xf32> to vector<2x8x32xf32>
      %c0_61 = arith.constant 0 : index
      %c0_62 = arith.constant 0 : index
      %c0_63 = arith.constant 0 : index
      %109 = vector.load %arg9[%c0_61, %c0_62, %c0_63] : memref<2x8x32xf32, #tpu.memory_space<vmem>>, vector<2x8x32xf32>
      tpu.vector_store %arg9[%c0_61, %c0_62, %c0_63], %108 {strides = array<i32>} : memref<2x8x32xf32, #tpu.memory_space<vmem>>, vector<2x8x32xf32>,
    } else {
    }
    %c0 = arith.constant 0 : index
    %c0_1 = arith.constant 0 : index
    %c0_2 = arith.constant 0 : index
    %3 = vector.load %arg1[%c0, %c0_1, %c0_2] : memref<1x2x128xf32, #tpu.memory_space<vmem>>, vector<1x2x128xf32>
    %4 = vector.shape_cast %3 : vector<1x2x128xf32> to vector<2x128xf32>
    %c0_3 = arith.constant 0 : index
    %c128 = arith.constant 128 : index
    %5 = vector.load %arg8[%c0_3, %c128] : memref<2x384xf32, #tpu.memory_space<vmem>>, vector<2x128xf32>
    tpu.vector_store %arg8[%c0_3, %c128], %4 {strides = array<i32>} : memref<2x384xf32, #tpu.memory_space<vmem>>, vector<2x128xf32>,
    %c0_4 = arith.constant 0 : index
    %c0_5 = arith.constant 0 : index
    %6 = vector.load %arg8[%c0_4, %c0_5] : memref<2x384xf32, #tpu.memory_space<vmem>>, vector<2x256xf32>
    %c0_6 = arith.constant 0 : index
    %c256 = arith.constant 256 : index
    %7 = vector.load %arg8[%c0_6, %c256] : memref<2x384xf32, #tpu.memory_space<vmem>>, vector<2x128xf32>
    %c0_7 = arith.constant 0 : index
    %c0_8 = arith.constant 0 : index
    %8 = vector.load %arg4[%c0_7, %c0_8] : memref<256x640xf32, #tpu.memory_space<vmem>>, vector<256x640xf32>
    %cst = arith.constant dense<0.000000e+00> : vector<2x640xf32>
    %9 = tpu.matmul %6, %8, %cst {dimension_numbers = #tpu.dot_dimension_numbers<[1], [0], [0], [1], [0, 0, 1, 1], [], []>} : vector<2x256xf32>, vector<256x640xf32>, vector<2x640xf32> -> vector<2x640xf32>
    %10 = vector.extract_strided_slice %9 {offsets = [0, 0], sizes = [2, 32], strides = [1, 1]} : vector<2x640xf32> to vector<2x32xf32>
    %11 = vector.extract_strided_slice %9 {offsets = [0, 128], sizes = [2, 512], strides = [1, 1]} : vector<2x640xf32> to vector<2x512xf32>
    %c0_9 = arith.constant 0 : index
    %c0_10 = arith.constant 0 : index
    %12 = vector.load %arg6[%c0_9, %c0_10] : memref<1x896xf32, #tpu.memory_space<vmem>>, vector<1x32xf32>
    %c0_11 = arith.constant 0 : index
    %c768 = arith.constant 768 : index
    %13 = vector.load %arg6[%c0_11, %c768] : memref<1x896xf32, #tpu.memory_space<vmem>>, vector<1x32xf32>
    %c0_12 = arith.constant 0 : index
    %c0_13 = arith.constant 0 : index
    %c0_14 = arith.constant 0 : index
    %14 = vector.load %arg9[%c0_12, %c0_13, %c0_14] : memref<2x8x32xf32, #tpu.memory_space<vmem>>, vector<2x8x32xf32>
    %15 = vector.broadcast %12 : vector<1x32xf32> to vector<2x32xf32>
    %16 = arith.addf %10, %15 : vector<2x32xf32>
    %17 = vector.shape_cast %16 : vector<2x32xf32> to vector<2x1x32xf32>
    %18 = vector.broadcast %17 : vector<2x1x32xf32> to vector<2x8x32xf32>
    %19 = arith.addf %14, %18 : vector<2x8x32xf32>
    %20 = math.tanh %19 : vector<2x8x32xf32>
    %21 = vector.shape_cast %13 : vector<1x32xf32> to vector<1x1x32xf32>
    %22 = vector.broadcast %21 : vector<1x1x32xf32> to vector<2x8x32xf32>
    %23 = arith.mulf %20, %22 : vector<2x8x32xf32>
    %cst_15 = arith.constant dense<0.000000e+00> : vector<2x8xf32>
    %24 = vector.multi_reduction <add>, %23, %cst_15 [2] : vector<2x8x32xf32> to vector<2x8xf32>
    %25 = tpu.iota {dimensions = array<i32: 1>} : vector<2x8xi32>
    %c0_16 = arith.constant 0 : index
    %c256_17 = arith.constant 256 : index
    %26 = vector.load %arg3[%c0_16, %c256_17] : memref<2x384xf32, #tpu.memory_space<vmem>>, vector<2x1xf32>
    %27 = arith.fptosi %26 : vector<2x1xf32> to vector<2x1xi32>
    %28 = vector.broadcast %27 : vector<2x1xi32> to vector<2x8xi32>
    %29 = arith.cmpi slt, %25, %28 : vector<2x8xi32>
    %cst_18 = arith.constant 0xFF800000 : f32
    %30 = vector.broadcast %cst_18 : f32 to vector<2x8xf32>
    %31 = arith.select %29, %24, %30 : vector<2x8xi1>, vector<2x8xf32>
    %cst_19 = arith.constant dense<0xFF800000> : vector<2xf32>
    %32 = vector.multi_reduction <maximumf>, %31, %cst_19 [1] : vector<2x8xf32> to vector<2xf32>
    %33 = vector.shape_cast %32 : vector<2xf32> to vector<2x1xf32>
    %34 = vector.broadcast %33 : vector<2x1xf32> to vector<2x8xf32>
    %35 = arith.subf %31, %34 : vector<2x8xf32>
    %36 = math.exp %35 : vector<2x8xf32>
    %cst_20 = arith.constant dense<0.000000e+00> : vector<2xf32>
    %37 = vector.multi_reduction <add>, %36, %cst_20 [1] : vector<2x8xf32> to vector<2xf32>
    %38 = vector.shape_cast %37 : vector<2xf32> to vector<2x1xf32>
    %39 = tpu.reciprocal %38 {approx = true} : vector<2x1xf32> -> vector<2x1xf32>
    %40 = vector.broadcast %39 : vector<2x1xf32> to vector<2x8xf32>
    %41 = arith.mulf %36, %40 : vector<2x8xf32>
    %42 = vector.shape_cast %41 : vector<2x8xf32> to vector<2x1x8xf32>
    %c0_21 = arith.constant 0 : index
    %c0_22 = arith.constant 0 : index
    %c0_23 = arith.constant 0 : index
    %43 = vector.load %arg2[%c0_21, %c0_22, %c0_23] : memref<2x8x32xf32, #tpu.memory_space<vmem>>, vector<2x8x32xf32>
    "tpu.trace_start"() <{level = 10 : i32, message = "bqs,bsh->bqh"}> : () -> ()
    %cst_24 = arith.constant dense<0.000000e+00> : vector<2x1x32xf32>
    %44 = tpu.matmul %42, %43, %cst_24 {dimension_numbers = #tpu.dot_dimension_numbers<[2], [1], [1], [2], [0, 0, 0, 1, 1, 2], [0], [0]>} : vector<2x1x8xf32>, vector<2x8x32xf32>, vector<2x1x32xf32> -> vector<2x1x32xf32>
    "tpu.trace_stop"() : () -> ()
    %45 = vector.shape_cast %44 : vector<2x1x32xf32> to vector<2x32xf32>
    %c0_25 = arith.constant 0 : index
    %c128_26 = arith.constant 128 : index
    %46 = vector.load %arg5[%c0_25, %c128_26] : memref<128x768xf32, #tpu.memory_space<vmem>>, vector<32x512xf32>
    %cst_27 = arith.constant dense<0.000000e+00> : vector<2x512xf32>
    %47 = tpu.matmul %45, %46, %cst_27 {dimension_numbers = #tpu.dot_dimension_numbers<[1], [0], [0], [1], [0, 0, 1, 1], [], []>} : vector<2x32xf32>, vector<32x512xf32>, vector<2x512xf32> -> vector<2x512xf32>
    %48 = arith.addf %11, %47 : vector<2x512xf32>
    %c0_28 = arith.constant 0 : index
    %c128_29 = arith.constant 128 : index
    %49 = vector.load %arg6[%c0_28, %c128_29] : memref<1x896xf32, #tpu.memory_space<vmem>>, vector<1x512xf32>
    %50 = vector.broadcast %49 : vector<1x512xf32> to vector<2x512xf32>
    %51 = arith.addf %48, %50 : vector<2x512xf32>
    %52 = vector.extract_strided_slice %51 {offsets = [0, 0], sizes = [2, 128], strides = [1, 1]} : vector<2x512xf32> to vector<2x128xf32>
    %53 = arith.negf %52 : vector<2x128xf32>
    %54 = math.exp %53 : vector<2x128xf32>
    %cst_30 = arith.constant 1.000000e+00 : f32
    %55 = vector.broadcast %cst_30 : f32 to vector<2x128xf32>
    %56 = arith.addf %55, %54 : vector<2x128xf32>
    %57 = arith.divf %55, %56 : vector<2x128xf32>
    %58 = vector.extract_strided_slice %51 {offsets = [0, 128], sizes = [2, 128], strides = [1, 1]} : vector<2x512xf32> to vector<2x128xf32>
    %59 = arith.negf %58 : vector<2x128xf32>
    %60 = math.exp %59 : vector<2x128xf32>
    %cst_31 = arith.constant 1.000000e+00 : f32
    %61 = vector.broadcast %cst_31 : f32 to vector<2x128xf32>
    %62 = arith.addf %61, %60 : vector<2x128xf32>
    %63 = arith.divf %61, %62 : vector<2x128xf32>
    %64 = vector.extract_strided_slice %51 {offsets = [0, 256], sizes = [2, 128], strides = [1, 1]} : vector<2x512xf32> to vector<2x128xf32>
    %65 = math.tanh %64 : vector<2x128xf32>
    %66 = vector.extract_strided_slice %51 {offsets = [0, 384], sizes = [2, 128], strides = [1, 1]} : vector<2x512xf32> to vector<2x128xf32>
    %67 = arith.negf %66 : vector<2x128xf32>
    %68 = math.exp %67 : vector<2x128xf32>
    %cst_32 = arith.constant 1.000000e+00 : f32
    %69 = vector.broadcast %cst_32 : f32 to vector<2x128xf32>
    %70 = arith.addf %69, %68 : vector<2x128xf32>
    %71 = arith.divf %69, %70 : vector<2x128xf32>
    %72 = arith.mulf %63, %7 : vector<2x128xf32>
    %73 = arith.mulf %57, %65 : vector<2x128xf32>
    %74 = arith.addf %72, %73 : vector<2x128xf32>
    %75 = math.tanh %74 : vector<2x128xf32>
    %76 = arith.mulf %71, %75 : vector<2x128xf32>
    %c0_33 = arith.constant 0 : index
    %c0_34 = arith.constant 0 : index
    %77 = vector.load %arg8[%c0_33, %c0_34] : memref<2x384xf32, #tpu.memory_space<vmem>>, vector<2x128xf32>
    tpu.vector_store %arg8[%c0_33, %c0_34], %76 {strides = array<i32>} : memref<2x384xf32, #tpu.memory_space<vmem>>, vector<2x128xf32>,
    %c0_35 = arith.constant 0 : index
    %c256_36 = arith.constant 256 : index
    %78 = vector.load %arg8[%c0_35, %c256_36] : memref<2x384xf32, #tpu.memory_space<vmem>>, vector<2x128xf32>
    tpu.vector_store %arg8[%c0_35, %c256_36], %74 {strides = array<i32>} : memref<2x384xf32, #tpu.memory_space<vmem>>, vector<2x128xf32>,
    %c0_37 = arith.constant 0 : index
    %c640 = arith.constant 640 : index
    %79 = vector.load %arg5[%c0_37, %c640] : memref<128x768xf32, #tpu.memory_space<vmem>>, vector<128x128xf32>
    %cst_38 = arith.constant dense<0.000000e+00> : vector<2x128xf32>
    %80 = tpu.matmul %76, %79, %cst_38 {dimension_numbers = #tpu.dot_dimension_numbers<[1], [0], [0], [1], [0, 0, 1, 1], [], []>} : vector<2x128xf32>, vector<128x128xf32>, vector<2x128xf32> -> vector<2x128xf32>
    %c0_39 = arith.constant 0 : index
    %c640_40 = arith.constant 640 : index
    %81 = vector.load %arg6[%c0_39, %c640_40] : memref<1x896xf32, #tpu.memory_space<vmem>>, vector<1x128xf32>
    %82 = vector.broadcast %81 : vector<1x128xf32> to vector<2x128xf32>
    %83 = arith.addf %80, %82 : vector<2x128xf32>
    %cst_41 = arith.constant dense<0xFF800000> : vector<2xf32>
    %84 = vector.multi_reduction <maximumf>, %83, %cst_41 [1] : vector<2x128xf32> to vector<2xf32>
    %85 = vector.shape_cast %84 : vector<2xf32> to vector<2x1xf32>
    %86 = vector.broadcast %85 : vector<2x1xf32> to vector<2x128xf32>
    %87 = arith.subf %83, %86 : vector<2x128xf32>
    %88 = math.exp %87 : vector<2x128xf32>
    %cst_42 = arith.constant dense<0.000000e+00> : vector<2xf32>
    %89 = vector.multi_reduction <add>, %88, %cst_42 [1] : vector<2x128xf32> to vector<2xf32>
    %90 = vector.shape_cast %89 : vector<2xf32> to vector<2x1xf32>
    %91 = math.log %90 : vector<2x1xf32>
    %92 = arith.addf %91, %85 : vector<2x1xf32>
    %93 = vector.broadcast %92 : vector<2x1xf32> to vector<2x128xf32>
    %94 = arith.subf %83, %93 : vector<2x128xf32>
    %cst_43 = arith.constant 0.000000e+00 : f32
    %95 = vector.broadcast %cst_43 : f32 to vector<2x120xf32>
    %96 = tpu.concatenate %94, %76, %74, %41, %95 in 1 : vector<2x128xf32>, vector<2x128xf32>, vector<2x128xf32>, vector<2x8xf32>, vector<2x120xf32> -> vector<2x512xf32>
    %c0_44 = arith.constant 0 : index
    %c0_45 = arith.constant 0 : index
    %c0_46 = arith.constant 0 : index
    %97 = vector.load %arg7[%c0_44, %c0_45, %c0_46] : memref<1x2x512xf32, #tpu.memory_space<vmem>>, vector<1x2x512xf32>
    %98 = vector.shape_cast %97 : vector<1x2x512xf32> to vector<2x512xf32>
    %99 = vector.shape_cast %96 : vector<2x512xf32> to vector<1x2x512xf32>
    tpu.vector_store %arg7[%c0_44, %c0_45, %c0_46], %99 {strides = array<i32>} : memref<1x2x512xf32, #tpu.memory_space<vmem>>, vector<1x2x512xf32>,
    return
  }
  func.func @transform_0(%arg0: i32) -> (i32, i32, i32) {
    %c0_i32 = arith.constant 0 : i32
    %c0_i32_0 = arith.constant 0 : i32
    %c0_i32_1 = arith.constant 0 : i32
    return %arg0, %c0_i32, %c0_i32_0 : i32, i32, i32
  }
  func.func @transform_1(%arg0: i32) -> (i32, i32, i32) {
    %c0_i32 = arith.constant 0 : i32
    %c0_i32_0 = arith.constant 0 : i32
    %c0_i32_1 = arith.constant 0 : i32
    %c0_i32_2 = arith.constant 0 : i32
    return %c0_i32, %c0_i32_0, %c0_i32_1 : i32, i32, i32
  }
  func.func @transform_2(%arg0: i32) -> (i32, i32) {
    %c0_i32 = arith.constant 0 : i32
    %c0_i32_0 = arith.constant 0 : i32
    %c0_i32_1 = arith.constant 0 : i32
    return %c0_i32, %c0_i32_0 : i32, i32
  }
  func.func @transform_3(%arg0: i32) -> (i32, i32) {
    %c0_i32 = arith.constant 0 : i32
    %c0_i32_0 = arith.constant 0 : i32
    %c0_i32_1 = arith.constant 0 : i32
    return %c0_i32, %c0_i32_0 : i32, i32
  }
  func.func @transform_4(%arg0: i32) -> (i32, i32) {
    %c0_i32 = arith.constant 0 : i32
    %c0_i32_0 = arith.constant 0 : i32
    %c0_i32_1 = arith.constant 0 : i32
    return %c0_i32, %c0_i32_0 : i32, i32
  }
  func.func @transform_5(%arg0: i32) -> (i32, i32) {
    %c0_i32 = arith.constant 0 : i32
    %c0_i32_0 = arith.constant 0 : i32
    %c0_i32_1 = arith.constant 0 : i32
    return %c0_i32, %c0_i32_0 : i32, i32
  }
  func.func @transform_6(%arg0: i32) -> (i32, i32, i32) {
    %c0_i32 = arith.constant 0 : i32
    %c0_i32_0 = arith.constant 0 : i32
    %c0_i32_1 = arith.constant 0 : i32
    return %arg0, %c0_i32, %c0_i32_0 : i32, i32, i32
  }
}

</mosaic_0001>

<llo_original>
// kernel: tpu_custom_call.1
$region0: #{tpu_custom_call.1}
  #allocation0 [shape = 'u32[]', space=smem, size = 0x4, offset = 0x4, fixed_abs, tag = 'smem constant byte address 0x4 - core index']
  #allocation1 [shape = 'u32[144,128]{1,0:T(1,128)}', space=vmem, size = 0x12000, scoped, tag = 'internal scratch']
  #allocation2 [shape = 'f32[2,384]{1,0:T(2,128)}', space=vmem, size = 0xc00, scoped, tag = 'scratch operand']
  #allocation3 [shape = 'f32[2,8,32]{2,1,0:T(8,128)}', space=vmem, size = 0x2000, scoped, tag = 'scratch operand']
  %s0 = inlined_call_operand.hbm [shape: f32[1,2,128], index: 0, kind: input, shape index: {}]
  %s1 = inlined_call_operand.hbm [shape: f32[2,8,32], index: 1, kind: input, shape index: {}]
  %s2 = inlined_call_operand.vmem [shape: f32[2,384], index: 2, kind: input, shape index: {}]
  %s3 = inlined_call_operand.hbm [shape: f32[256,640], index: 3, kind: input, shape index: {}]
  %s4 = inlined_call_operand.hbm [shape: f32[128,768], index: 4, kind: input, shape index: {}]
  %s5 = inlined_call_operand.vmem [shape: f32[1,896], index: 5, kind: input, shape index: {}]
  %s6 = inlined_call_operand.hbm [shape: f32[1,2,512], index: 6, kind: output, shape index: {}]
  %s7 = sld [smem:[#allocation0]]
  $region54: #{tpu_custom_call.1} parent=0
    _
  %s9 = ssub.s32 1, %s7
  %s10 = scalar_select 0, %s9, %s7
  $region1: #{tpu_custom_call.1} parent=0
    #allocation4 [shape = 'u8[1024]{0}', space=vmem, size = 0x400, scoped, tag = 'input window, operand 0, single buffered']
    #allocation5 [shape = 's32[1]{0}', space=sflag, size = 0x4, scoped, tag = 'scoped memory for tpu_custom_call.1']
    #allocation6 [shape = 's32[1]{0}', space=sflag, size = 0x4, scoped, tag = 'scoped memory for tpu_custom_call.1']
    #allocation7 [shape = 'u8[8192]{0}', space=vmem, size = 0x2000, scoped, tag = 'input window, operand 1, single buffered']
    #allocation8 [shape = 's32[1]{0}', space=sflag, size = 0x4, scoped, tag = 'scoped memory for tpu_custom_call.1']
    #allocation9 [shape = 'u8[655360]{0}', space=vmem, size = 0xa0000, scoped, tag = 'input window, operand 3, single buffered']
    #allocation10 [shape = 'u8[393216]{0}', space=vmem, size = 0x60000, scoped, tag = 'input window, operand 4, single buffered']
    #allocation11 [shape = 's32[1]{0}', space=sflag, size = 0x4, scoped, tag = 'scoped memory for tpu_custom_call.1']
    #allocation12 [shape = 'u8[4096]{0}', space=vmem, size = 0x1000, scoped, tag = 'output window, operand 0, single buffered']
    %11 = vsyncpa [#allocation5], 0
    %12 = vsyncpa [#allocation8], 0
    %13 = vsyncpa [#allocation11], 0
    %14 = vsyncpa [#allocation6], 0
    // Predicated region
    $region2: #{tpu_custom_call.1} parent=1 // pred_check
      _
    $region3: #{tpu_custom_call.1} parent=1 // pred_check_branch
      %16 = sbr.rel (0) target = $region5
    $region4: #{tpu_custom_call.1} parent=1 // pred_region
      %s18 = ssub.s32 32, 32
      %19 = vsyncadd [#allocation5], %s18
      %s21 = sshll.u32 [#allocation4], 4
      %s22 = int_to_ptr.vmem [resolvable:$true] %s21
      %24 = dma.hbm_to_vmem [thread:$0]  %s0, 32, %s22, [#allocation5]
    $region5: #{tpu_custom_call.1} parent=1 // pred_fallthru
      _
    // Predicated region
    $region6: #{tpu_custom_call.1} parent=1 // pred_check
      _
    $region7: #{tpu_custom_call.1} parent=1 // pred_check_branch
      %26 = sbr.rel (0) target = $region9
    $region8: #{tpu_custom_call.1} parent=1 // pred_region
      %s28 = ssub.s32 256, 256
      %29 = vsyncadd [#allocation8], %s28
      %s30 = sshll.u32 [#allocation7], 4
      %s31 = int_to_ptr.vmem [resolvable:$true] %s30
      %36 = dma.hbm_to_vmem [thread:$0]  %s1, 256, %s31, [#allocation8], 128, 128, 8
    $region9: #{tpu_custom_call.1} parent=1 // pred_fallthru
      _
    // Predicated region
    $region10: #{tpu_custom_call.1} parent=1 // pred_check
      _
    $region11: #{tpu_custom_call.1} parent=1 // pred_check_branch
      %38 = sbr.rel (0) target = $region13
    $region12: #{tpu_custom_call.1} parent=1 // pred_region
      _
    $region13: #{tpu_custom_call.1} parent=1 // pred_fallthru
      _
    // Predicated region
    $region14: #{tpu_custom_call.1} parent=1 // pred_check
      _
    $region15: #{tpu_custom_call.1} parent=1 // pred_check_branch
      %40 = sbr.rel (0) target = $region17
    $region16: #{tpu_custom_call.1} parent=1 // pred_region
      %s42 = ssub.s32 20480, 20480
      %43 = vsyncadd [#allocation8], %s42
      %s44 = sshll.u32 [#allocation9], 4
      %s45 = int_to_ptr.vmem [resolvable:$true] %s44
      %50 = dma.hbm_to_vmem [thread:$0]  %s3, 20480, %s45, [#allocation8], 640, 640, 40
    $region17: #{tpu_custom_call.1} parent=1 // pred_fallthru
      _
    // Predicated region
    $region18: #{tpu_custom_call.1} parent=1 // pred_check
      _
    $region19: #{tpu_custom_call.1} parent=1 // pred_check_branch
      %52 = sbr.rel (0) target = $region21
    $region20: #{tpu_custom_call.1} parent=1 // pred_region
      %s54 = ssub.s32 12288, 12288
      %55 = vsyncadd [#allocation11], %s54
      %s56 = sshll.u32 [#allocation10], 4
      %s57 = int_to_ptr.vmem [resolvable:$true] %s56
      %62 = dma.hbm_to_vmem [thread:$0]  %s4, 12288, %s57, [#allocation11], 768, 768, 48
    $region21: #{tpu_custom_call.1} parent=1 // pred_fallthru
      _
    // Predicated region
    $region22: #{tpu_custom_call.1} parent=1 // pred_check
      _
    $region23: #{tpu_custom_call.1} parent=1 // pred_check_branch
      %64 = sbr.rel (0) target = $region25
    $region24: #{tpu_custom_call.1} parent=1 // pred_region
      _
    $region25: #{tpu_custom_call.1} parent=1 // pred_fallthru
      _
    // Predicated region
    $region26: #{tpu_custom_call.1} parent=1 // pred_check
      _
    $region27: #{tpu_custom_call.1} parent=1 // pred_check_branch
      %66 = sbr.rel (0) target = $region29
    $region28: #{tpu_custom_call.1} parent=1 // pred_region
      %67 = dma.done [#allocation5], 32
    $region29: #{tpu_custom_call.1} parent=1 // pred_fallthru
      _
    // Predicated region
    $region30: #{tpu_custom_call.1} parent=1 // pred_check
      _
    $region31: #{tpu_custom_call.1} parent=1 // pred_check_branch
      %69 = sbr.rel (0) target = $region33
    $region32: #{tpu_custom_call.1} parent=1 // pred_region
      %70 = dma.done [#allocation8], 256
    $region33: #{tpu_custom_call.1} parent=1 // pred_fallthru
      _
    // Predicated region
    $region34: #{tpu_custom_call.1} parent=1 // pred_check
      _
    $region35: #{tpu_custom_call.1} parent=1 // pred_check_branch
      %72 = sbr.rel (0) target = $region37
    $region36: #{tpu_custom_call.1} parent=1 // pred_region
      %73 = dma.done [#allocation8], 20480
    $region37: #{tpu_custom_call.1} parent=1 // pred_fallthru
      _
    // Predicated region
    $region38: #{tpu_custom_call.1} parent=1 // pred_check
      _
    $region39: #{tpu_custom_call.1} parent=1 // pred_check_branch
      %75 = sbr.rel (0) target = $region41
    $region40: #{tpu_custom_call.1} parent=1 // pred_region
      %76 = dma.done [#allocation11], 12288
    $region41: #{tpu_custom_call.1} parent=1 // pred_fallthru
      _
    %p77 = scmp.eq.s32.totalorder 0, 0
    // Predicated region
    $region42: #{tpu_custom_call.1} parent=1 // pred_check
      %p78 = pneg %p77
    $region43: #{tpu_custom_call.1} parent=1 // pred_check_branch
      %80 = sbr.rel (%p78) target = $region45
    $region44: #{tpu_custom_call.1} parent=1 // pred_region
      %v81 = vld [vmem:[%s2] sm:$0x3]
      %82 = vst [vmem:[#allocation2] sm:$0x3] %v81
      %v83 = vld [vmem:[%s2 + $0x2] sm:$0x3]
      %84 = vst [vmem:[#allocation2 + $0x4] sm:$0x3] %v83
      %v85 = vld [vmem:[#allocation7] sm:$0xff]
      %v86 = vld [vmem:[#allocation7 + $0x8] sm:$0xff]
      %v87 = vld [vmem:[#allocation10] sm:$0xff]
      %v88 = vld [vmem:[#allocation10 + $0x30] sm:$0xff]
      %v89 = vld [vmem:[#allocation10 + $0x60] sm:$0xff]
      %v90 = vld [vmem:[#allocation10 + $0x90] sm:$0xff]
      %vm91 = vcmask 261120
      %v93 = vsel %vm91, %v85, 0
      %v96 = vsel %vm91, %v86, 0
      %98 = vmatprep.subr.mxu0 0.0
      %99 = vmatpush1.msra.mxu0 %v87
      %100 = vmatprep.subr.mxu0 0.0
      %101 = vmatpush1.msra.mxu0 %v88
      %102 = vmatprep.subr.mxu0 0.0
      %103 = vmatpush1.msra.mxu0 %v89
      %104 = vmatprep.subr.mxu0 0.0
      %105 = vmatpush1.msra.mxu0 %v90
      %106 = vmatprep.subr.mxu0 0.0
      %107 = vmatpush1.msra.mxu0 0.0
      %108 = vmatprep.subr.mxu0 0.0
      %109 = vmatpush1.msra.mxu0 0.0
      %110 = vmatprep.subr.mxu0 0.0
      %111 = vmatpush1.msra.mxu0 0.0
      %112 = vmatprep.subr.mxu0 0.0
      %113 = vmatpush1.msra.mxu0 0.0
      %114 = vmatprep.subr.mxu0 0.0
      %115 = vmatpush1.msra.mxu0 0.0
      %116 = vmatprep.subr.mxu0 0.0
      %117 = vmatpush1.msra.mxu0 0.0
      %118 = vmatprep.subr.mxu0 0.0
      %119 = vmatpush1.msra.mxu0 0.0
      %120 = vmatprep.subr.mxu0 0.0
      %121 = vmatpush1.msra.mxu0 0.0
      %122 = vmatprep.subr.mxu0 0.0
      %123 = vmatpush1.msra.mxu0 0.0
      %124 = vmatprep.subr.mxu0 0.0
      %125 = vmatpush1.msra.mxu0 0.0
      %126 = vmatprep.subr.mxu0 0.0
      %127 = vmatpush1.msra.mxu0 0.0
      %128 = vmatprep.subr.mxu0 0.0
      %129 = vmatpush1.msra.mxu0 0.0
      %130 = vmatprep.subr.mxu0 0.0
      %131 = vmatpush1.msra.mxu0 0.0
      %132 = vmatprep.subr.mxu0 0.0
      %133 = vmatpush1.msra.mxu0 0.0
      %134 = vmatprep.subr.mxu0 0.0
      %135 = vmatpush1.msra.mxu0 0.0
      %136 = vmatprep.subr.mxu0 0.0
      %137 = vmatpush1.msra.mxu0 0.0
      %138 = vmatprep.subr.mxu0 0.0
      %139 = vmatpush1.msra.mxu0 0.0
      %140 = vmatprep.subr.mxu0 0.0
      %141 = vmatpush1.msra.mxu0 0.0
      %142 = vmatprep.subr.mxu0 0.0
      %143 = vmatpush1.msra.mxu0 0.0
      %144 = vmatprep.subr.mxu0 0.0
      %145 = vmatpush1.msra.mxu0 0.0
      %146 = vmatprep.subr.mxu0 0.0
      %147 = vmatpush1.msra.mxu0 0.0
      %148 = vmatprep.subr.mxu0 0.0
      %149 = vmatpush1.msra.mxu0 0.0
      %150 = vmatprep.subr.mxu0 0.0
      %151 = vmatpush1.msra.mxu0 0.0
      %152 = vmatprep.subr.mxu0 0.0
      %153 = vmatpush1.msra.mxu0 0.0
      %154 = vmatprep.subr.mxu0 0.0
      %155 = vmatpush1.msra.mxu0 0.0
      %156 = vmatprep.subr.mxu0 0.0
      %157 = vmatpush1.msra.mxu0 0.0
      %158 = vmatprep.subr.mxu0 0.0
      %159 = vmatpush1.msra.mxu0 0.0
      %160 = vmatprep.subr.mxu0 0.0
      %161 = vmatpush1.msra.mxu0 0.0
      %162 = vmatprep.mubr.f32.mxu0 0.0
      %163 = vmatmul.mubr.f32.gmra.mrb[0].mxu0 %v93
      %v164 = vpop.f32.mrb[0].mxu0
      %v165 = vadd.f32 0.0, %v164
      %v166 = vpop.f32.mrb[0].mxu0
      %167 = vmatprep.mubr.f32.mxu0 0.0
      %168 = vmatmul.mubr.f32.gmra.mrb[0].mxu0 %v96
      %v169 = vpop.f32.mrb[0].mxu0
      %v170 = vadd.f32 0.0, %v169
      %v171 = vpop.f32.mrb[0].mxu0
      %172 = vdwg.mxu0
      %173 = vst.msk [vmem:[#allocation3] sm:$0xff] %vm91, %v165
      %174 = vst.msk [vmem:[#allocation3 + $0x8] sm:$0xff] %vm91, %v170
    $region45: #{tpu_custom_call.1} parent=1 // pred_fallthru
      _
    %v175 = vld [vmem:[#allocation4] sm:$0x3]
    %176 = vst [vmem:[#allocation2 + $0x2] sm:$0x3] %v175
    %v177 = vld [vmem:[#allocation2] sm:$0xf]
    %v178 = vld [vmem:[#allocation2 + $0x4] sm:$0x3]
    %v179 = vld [vmem:[#allocation9] sm:$0xff]
    %v180 = vld [vmem:[#allocation9 + $0x8] sm:$0xff]
    %v181 = vld [vmem:[#allocation9 + $0x10] sm:$0xff]
    %v182 = vld [vmem:[#allocation9 + $0x18] sm:$0xff]
    %v183 = vld [vmem:[#allocation9 + $0x20] sm:$0xff]
    %v184 = vld [vmem:[#allocation9 + $0x28] sm:$0xff]
    %v185 = vld [vmem:[#allocation9 + $0x30] sm:$0xff]
    %v186 = vld [vmem:[#allocation9 + $0x38] sm:$0xff]
    %v187 = vld [vmem:[#allocation9 + $0x40] sm:$0xff]
    %v188 = vld [vmem:[#allocation9 + $0x48] sm:$0xff]
    %v189 = vld [vmem:[#allocation9 + $0x50] sm:$0xff]
    %v190 = vld [vmem:[#allocation9 + $0x58] sm:$0xff]
    %v191 = vld [vmem:[#allocation9 + $0x60] sm:$0xff]
    %v192 = vld [vmem:[#allocation9 + $0x68] sm:$0xff]
    %v193 = vld [vmem:[#allocation9 + $0x70] sm:$0xff]
    %v194 = vld [vmem:[#allocation9 + $0x78] sm:$0xff]
    %v195 = vld [vmem:[#allocation9 + $0x80] sm:$0xff]
    %v196 = vld [vmem:[#allocation9 + $0x88] sm:$0xff]
    %v197 = vld [vmem:[#allocation9 + $0x90] sm:$0xff]
    %v198 = vld [vmem:[#allocation9 + $0x98] sm:$0xff]
    %v199 = vld [vmem:[#allocation9 + $0xa0] sm:$0xff]
    %v200 = vld [vmem:[#allocation9 + $0xa8] sm:$0xff]
    %v201 = vld [vmem:[#allocation9 + $0xb0] sm:$0xff]
    %v202 = vld [vmem:[#allocation9 + $0xb8] sm:$0xff]
    %v203 = vld [vmem:[#allocation9 + $0xc0] sm:$0xff]
    %v204 = vld [vmem:[#allocation9 + $0xc8] sm:$0xff]
    %v205 = vld [vmem:[#allocation9 + $0xd0] sm:$0xff]
    %v206 = vld [vmem:[#allocation9 + $0xd8] sm:$0xff]
    %v207 = vld [vmem:[#allocation9 + $0xe0] sm:$0xff]
    %v208 = vld [vmem:[#allocation9 + $0xe8] sm:$0xff]
    %v209 = vld [vmem:[#allocation9 + $0xf0] sm:$0xff]
    %v210 = vld [vmem:[#allocation9 + $0xf8] sm:$0xff]
    %v211 = vld [vmem:[#allocation9 + $0x100] sm:$0xff]
    %v212 = vld [vmem:[#allocation9 + $0x108] sm:$0xff]
    %v213 = vld [vmem:[#allocation9 + $0x110] sm:$0xff]
    %v214 = vld [vmem:[#allocation9 + $0x118] sm:$0xff]
    %v215 = vld [vmem:[#allocation9 + $0x120] sm:$0xff]
    %v216 = vld [vmem:[#allocation9 + $0x128] sm:$0xff]
    %v217 = vld [vmem:[#allocation9 + $0x130] sm:$0xff]
    %v218 = vld [vmem:[#allocation9 + $0x138] sm:$0xff]
    %v219 = vld [vmem:[#allocation9 + $0x140] sm:$0xff]
    %v220 = vld [vmem:[#allocation9 + $0x148] sm:$0xff]
    %v221 = vld [vmem:[#allocation9 + $0x150] sm:$0xff]
    %v222 = vld [vmem:[#allocation9 + $0x158] sm:$0xff]
    %v223 = vld [vmem:[#allocation9 + $0x160] sm:$0xff]
    %v224 = vld [vmem:[#allocation9 + $0x168] sm:$0xff]
    %v225 = vld [vmem:[#allocation9 + $0x170] sm:$0xff]
    %v226 = vld [vmem:[#allocation9 + $0x178] sm:$0xff]
    %v227 = vld [vmem:[#allocation9 + $0x180] sm:$0xff]
    %v228 = vld [vmem:[#allocation9 + $0x188] sm:$0xff]
    %v229 = vld [vmem:[#allocation9 + $0x190] sm:$0xff]
    %v230 = vld [vmem:[#allocation9 + $0x198] sm:$0xff]
    %v231 = vld [vmem:[#allocation9 + $0x1a0] sm:$0xff]
    %v232 = vld [vmem:[#allocation9 + $0x1a8] sm:$0xff]
    %v233 = vld [vmem:[#allocation9 + $0x1b0] sm:$0xff]
    %v234 = vld [vmem:[#allocation9 + $0x1b8] sm:$0xff]
    %v235 = vld [vmem:[#allocation9 + $0x1c0] sm:$0xff]
    %v236 = vld [vmem:[#allocation9 + $0x1c8] sm:$0xff]
    %v237 = vld [vmem:[#allocation9 + $0x1d0] sm:$0xff]
    %v238 = vld [vmem:[#allocation9 + $0x1d8] sm:$0xff]
    %v239 = vld [vmem:[#allocation9 + $0x1e0] sm:$0xff]
    %v240 = vld [vmem:[#allocation9 + $0x1e8] sm:$0xff]
    %v241 = vld [vmem:[#allocation9 + $0x1f0] sm:$0xff]
    %v242 = vld [vmem:[#allocation9 + $0x1f8] sm:$0xff]
    %v243 = vld [vmem:[#allocation9 + $0x200] sm:$0xff]
    %v244 = vld [vmem:[#allocation9 + $0x208] sm:$0xff]
    %v245 = vld [vmem:[#allocation9 + $0x210] sm:$0xff]
    %v246 = vld [vmem:[#allocation9 + $0x218] sm:$0xff]
    %v247 = vld [vmem:[#allocation9 + $0x220] sm:$0xff]
    %v248 = vld [vmem:[#allocation9 + $0x228] sm:$0xff]
    %v249 = vld [vmem:[#allocation9 + $0x230] sm:$0xff]
    %v250 = vld [vmem:[#allocation9 + $0x238] sm:$0xff]
    %v251 = vld [vmem:[#allocation9 + $0x240] sm:$0xff]
    %v252 = vld [vmem:[#allocation9 + $0x248] sm:$0xff]
    %v253 = vld [vmem:[#allocation9 + $0x250] sm:$0xff]
    %v254 = vld [vmem:[#allocation9 + $0x258] sm:$0xff]
    %v255 = vld [vmem:[#allocation9 + $0x260] sm:$0xff]
    %v256 = vld [vmem:[#allocation9 + $0x268] sm:$0xff]
    %v257 = vld [vmem:[#allocation9 + $0x270] sm:$0xff]
    %v258 = vld [vmem:[#allocation9 + $0x278] sm:$0xff]
    %v259 = vld [vmem:[#allocation9 + $0x280] sm:$0xff]
    %v260 = vld [vmem:[#allocation9 + $0x288] sm:$0xff]
    %v261 = vld [vmem:[#allocation9 + $0x290] sm:$0xff]
    %v262 = vld [vmem:[#allocation9 + $0x298] sm:$0xff]
    %v263 = vld [vmem:[#allocation9 + $0x2a0] sm:$0xff]
    %v264 = vld [vmem:[#allocation9 + $0x2a8] sm:$0xff]
    %v265 = vld [vmem:[#allocation9 + $0x2b0] sm:$0xff]
    %v266 = vld [vmem:[#allocation9 + $0x2b8] sm:$0xff]
    %v267 = vld [vmem:[#allocation9 + $0x2c0] sm:$0xff]
    %v268 = vld [vmem:[#allocation9 + $0x2c8] sm:$0xff]
    %v269 = vld [vmem:[#allocation9 + $0x2d0] sm:$0xff]
    %v270 = vld [vmem:[#allocation9 + $0x2d8] sm:$0xff]
    %v271 = vld [vmem:[#allocation9 + $0x2e0] sm:$0xff]
    %v272 = vld [vmem:[#allocation9 + $0x2e8] sm:$0xff]
    %v273 = vld [vmem:[#allocation9 + $0x2f0] sm:$0xff]
    %v274 = vld [vmem:[#allocation9 + $0x2f8] sm:$0xff]
    %v275 = vld [vmem:[#allocation9 + $0x300] sm:$0xff]
    %v276 = vld [vmem:[#allocation9 + $0x308] sm:$0xff]
    %v277 = vld [vmem:[#allocation9 + $0x310] sm:$0xff]
    %v278 = vld [vmem:[#allocation9 + $0x318] sm:$0xff]
    %v279 = vld [vmem:[#allocation9 + $0x320] sm:$0xff]
    %v280 = vld [vmem:[#allocation9 + $0x328] sm:$0xff]
    %v281 = vld [vmem:[#allocation9 + $0x330] sm:$0xff]
    %v282 = vld [vmem:[#allocation9 + $0x338] sm:$0xff]
    %v283 = vld [vmem:[#allocation9 + $0x340] sm:$0xff]
    %v284 = vld [vmem:[#allocation9 + $0x348] sm:$0xff]
    %v285 = vld [vmem:[#allocation9 + $0x350] sm:$0xff]
    %v286 = vld [vmem:[#allocation9 + $0x358] sm:$0xff]
    %v287 = vld [vmem:[#allocation9 + $0x360] sm:$0xff]
    %v288 = vld [vmem:[#allocation9 + $0x368] sm:$0xff]
    %v289 = vld [vmem:[#allocation9 + $0x370] sm:$0xff]
    %v290 = vld [vmem:[#allocation9 + $0x378] sm:$0xff]
    %v291 = vld [vmem:[#allocation9 + $0x380] sm:$0xff]
    %v292 = vld [vmem:[#allocation9 + $0x388] sm:$0xff]
    %v293 = vld [vmem:[#allocation9 + $0x390] sm:$0xff]
    %v294 = vld [vmem:[#allocation9 + $0x398] sm:$0xff]
    %v295 = vld [vmem:[#allocation9 + $0x3a0] sm:$0xff]
    %v296 = vld [vmem:[#allocation9 + $0x3a8] sm:$0xff]
    %v297 = vld [vmem:[#allocation9 + $0x3b0] sm:$0xff]
    %v298 = vld [vmem:[#allocation9 + $0x3b8] sm:$0xff]
    %v299 = vld [vmem:[#allocation9 + $0x3c0] sm:$0xff]
    %v300 = vld [vmem:[#allocation9 + $0x3c8] sm:$0xff]
    %v301 = vld [vmem:[#allocation9 + $0x3d0] sm:$0xff]
    %v302 = vld [vmem:[#allocation9 + $0x3d8] sm:$0xff]
    %v303 = vld [vmem:[#allocation9 + $0x3e0] sm:$0xff]
    %v304 = vld [vmem:[#allocation9 + $0x3e8] sm:$0xff]
    %v305 = vld [vmem:[#allocation9 + $0x3f0] sm:$0xff]
    %v306 = vld [vmem:[#allocation9 + $0x3f8] sm:$0xff]
    %v307 = vld [vmem:[#allocation9 + $0x400] sm:$0xff]
    %v308 = vld [vmem:[#allocation9 + $0x408] sm:$0xff]
    %v309 = vld [vmem:[#allocation9 + $0x410] sm:$0xff]
    %v310 = vld [vmem:[#allocation9 + $0x418] sm:$0xff]
    %v311 = vld [vmem:[#allocation9 + $0x420] sm:$0xff]
    %v312 = vld [vmem:[#allocation9 + $0x428] sm:$0xff]
    %v313 = vld [vmem:[#allocation9 + $0x430] sm:$0xff]
    %v314 = vld [vmem:[#allocation9 + $0x438] sm:$0xff]
    %v315 = vld [vmem:[#allocation9 + $0x440] sm:$0xff]
    %v316 = vld [vmem:[#allocation9 + $0x448] sm:$0xff]
    %v317 = vld [vmem:[#allocation9 + $0x450] sm:$0xff]
    %v318 = vld [vmem:[#allocation9 + $0x458] sm:$0xff]
    %v319 = vld [vmem:[#allocation9 + $0x460] sm:$0xff]
    %v320 = vld [vmem:[#allocation9 + $0x468] sm:$0xff]
    %v321 = vld [vmem:[#allocation9 + $0x470] sm:$0xff]
    %v322 = vld [vmem:[#allocation9 + $0x478] sm:$0xff]
    %v323 = vld [vmem:[#allocation9 + $0x480] sm:$0xff]
    %v324 = vld [vmem:[#allocation9 + $0x488] sm:$0xff]
    %v325 = vld [vmem:[#allocation9 + $0x490] sm:$0xff]
    %v326 = vld [vmem:[#allocation9 + $0x498] sm:$0xff]
    %v327 = vld [vmem:[#allocation9 + $0x4a0] sm:$0xff]
    %v328 = vld [vmem:[#allocation9 + $0x4a8] sm:$0xff]
    %v329 = vld [vmem:[#allocation9 + $0x4b0] sm:$0xff]
    %v330 = vld [vmem:[#allocation9 + $0x4b8] sm:$0xff]
    %v331 = vld [vmem:[#allocation9 + $0x4c0] sm:$0xff]
    %v332 = vld [vmem:[#allocation9 + $0x4c8] sm:$0xff]
    %v333 = vld [vmem:[#allocation9 + $0x4d0] sm:$0xff]
    %v334 = vld [vmem:[#allocation9 + $0x4d8] sm:$0xff]
    %v335 = vld [vmem:[#allocation9 + $0x4e0] sm:$0xff]
    %v336 = vld [vmem:[#allocation9 + $0x4e8] sm:$0xff]
    %v337 = vld [vmem:[#allocation9 + $0x4f0] sm:$0xff]
    %v338 = vld [vmem:[#allocation9 + $0x4f8] sm:$0xff]
    %v341 = vunpack.c.l.s4 1983009808
    %v342 = vunpack.c.0.s8 %v341
    %v343 = vlaneseq
    %v344 = vshrl.u32 %v343, 7
    %v345 = vsub.s32 %v342, %v344
    %v346 = vrot.slane %v177, %v345
    %v347 = vcombine.high %v346, %v346
    %350 = vmatprep.subr.mxu0 %v180
    %351 = vmatpush1.msra.mxu0 %v179
    %352 = vmatprep.subr.mxu0 %v185
    %353 = vmatpush1.msra.mxu0 %v184
    %354 = vmatprep.subr.mxu0 %v190
    %355 = vmatpush1.msra.mxu0 %v189
    %356 = vmatprep.subr.mxu0 %v195
    %357 = vmatpush1.msra.mxu0 %v194
    %358 = vmatprep.subr.mxu0 %v200
    %359 = vmatpush1.msra.mxu0 %v199
    %360 = vmatprep.subr.mxu0 %v205
    %361 = vmatpush1.msra.mxu0 %v204
    %362 = vmatprep.subr.mxu0 %v210
    %363 = vmatpush1.msra.mxu0 %v209
    %364 = vmatprep.subr.mxu0 %v215
    %365 = vmatpush1.msra.mxu0 %v214
    %366 = vmatprep.subr.mxu0 %v220
    %367 = vmatpush1.msra.mxu0 %v219
    %368 = vmatprep.subr.mxu0 %v225
    %369 = vmatpush1.msra.mxu0 %v224
    %370 = vmatprep.subr.mxu0 %v230
    %371 = vmatpush1.msra.mxu0 %v229
    %372 = vmatprep.subr.mxu0 %v235
    %373 = vmatpush1.msra.mxu0 %v234
    %374 = vmatprep.subr.mxu0 %v240
    %375 = vmatpush1.msra.mxu0 %v239
    %376 = vmatprep.subr.mxu0 %v245
    %377 = vmatpush1.msra.mxu0 %v244
    %378 = vmatprep.subr.mxu0 %v250
    %379 = vmatpush1.msra.mxu0 %v249
    %380 = vmatprep.subr.mxu0 %v255
    %381 = vmatpush1.msra.mxu0 %v254
    %382 = vmatprep.subr.mxu0 %v260
    %383 = vmatpush1.msra.mxu0 %v259
    %384 = vmatprep.subr.mxu0 %v265
    %385 = vmatpush1.msra.mxu0 %v264
    %386 = vmatprep.subr.mxu0 %v270
    %387 = vmatpush1.msra.mxu0 %v269
    %388 = vmatprep.subr.mxu0 %v275
    %389 = vmatpush1.msra.mxu0 %v274
    %390 = vmatprep.subr.mxu0 %v280
    %391 = vmatpush1.msra.mxu0 %v279
    %392 = vmatprep.subr.mxu0 %v285
    %393 = vmatpush1.msra.mxu0 %v284
    %394 = vmatprep.subr.mxu0 %v290
    %395 = vmatpush1.msra.mxu0 %v289
    %396 = vmatprep.subr.mxu0 %v295
    %397 = vmatpush1.msra.mxu0 %v294
    %398 = vmatprep.subr.mxu0 %v300
    %399 = vmatpush1.msra.mxu0 %v299
    %400 = vmatprep.subr.mxu0 %v305
    %401 = vmatpush1.msra.mxu0 %v304
    %402 = vmatprep.subr.mxu0 %v310
    %403 = vmatpush1.msra.mxu0 %v309
    %404 = vmatprep.subr.mxu0 %v315
    %405 = vmatpush1.msra.mxu0 %v314
    %406 = vmatprep.subr.mxu0 %v320
    %407 = vmatpush1.msra.mxu0 %v319
    %408 = vmatprep.subr.mxu0 %v325
    %409 = vmatpush1.msra.mxu0 %v324
    %410 = vmatprep.subr.mxu0 %v330
    %411 = vmatpush1.msra.mxu0 %v329
    %412 = vmatprep.subr.mxu0 %v335
    %413 = vmatpush1.msra.mxu0 %v334
    %414 = vmatprep.mubr.f32.mxu0 %v347
    %415 = vmatmul.mubr.f32.gmra.mrb[0].mxu0 %v346
    %v416 = vpop.f32.mrb[0].mxu0
    %v417 = vadd.f32 0.0, %v416
    %v418 = vpop.f32.mrb[0].mxu0
    %v419 = vadd.f32 0.0, %v418
    %420 = vdwg.mxu0
    %421 = vmatprep.subr.mxu0 %v182
    %422 = vmatpush1.msra.mxu0 %v181
    %423 = vmatprep.subr.mxu0 %v187
    %424 = vmatpush1.msra.mxu0 %v186
    %425 = vmatprep.subr.mxu0 %v192
    %426 = vmatpush1.msra.mxu0 %v191
    %427 = vmatprep.subr.mxu0 %v197
    %428 = vmatpush1.msra.mxu0 %v196
    %429 = vmatprep.subr.mxu0 %v202
    %430 = vmatpush1.msra.mxu0 %v201
    %431 = vmatprep.subr.mxu0 %v207
    %432 = vmatpush1.msra.mxu0 %v206
    %433 = vmatprep.subr.mxu0 %v212
    %434 = vmatpush1.msra.mxu0 %v211
    %435 = vmatprep.subr.mxu0 %v217
    %436 = vmatpush1.msra.mxu0 %v216
    %437 = vmatprep.subr.mxu0 %v222
    %438 = vmatpush1.msra.mxu0 %v221
    %439 = vmatprep.subr.mxu0 %v227
    %440 = vmatpush1.msra.mxu0 %v226
    %441 = vmatprep.subr.mxu0 %v232
    %442 = vmatpush1.msra.mxu0 %v231
    %443 = vmatprep.subr.mxu0 %v237
    %444 = vmatpush1.msra.mxu0 %v236
    %445 = vmatprep.subr.mxu0 %v242
    %446 = vmatpush1.msra.mxu0 %v241
    %447 = vmatprep.subr.mxu0 %v247
    %448 = vmatpush1.msra.mxu0 %v246
    %449 = vmatprep.subr.mxu0 %v252
    %450 = vmatpush1.msra.mxu0 %v251
    %451 = vmatprep.subr.mxu0 %v257
    %452 = vmatpush1.msra.mxu0 %v256
    %453 = vmatprep.subr.mxu0 %v262
    %454 = vmatpush1.msra.mxu0 %v261
    %455 = vmatprep.subr.mxu0 %v267
    %456 = vmatpush1.msra.mxu0 %v266
    %457 = vmatprep.subr.mxu0 %v272
    %458 = vmatpush1.msra.mxu0 %v271
    %459 = vmatprep.subr.mxu0 %v277
    %460 = vmatpush1.msra.mxu0 %v276
    %461 = vmatprep.subr.mxu0 %v282
    %462 = vmatpush1.msra.mxu0 %v281
    %463 = vmatprep.subr.mxu0 %v287
    %464 = vmatpush1.msra.mxu0 %v286
    %465 = vmatprep.subr.mxu0 %v292
    %466 = vmatpush1.msra.mxu0 %v291
    %467 = vmatprep.subr.mxu0 %v297
    %468 = vmatpush1.msra.mxu0 %v296
    %469 = vmatprep.subr.mxu0 %v302
    %470 = vmatpush1.msra.mxu0 %v301
    %471 = vmatprep.subr.mxu0 %v307
    %472 = vmatpush1.msra.mxu0 %v306
    %473 = vmatprep.subr.mxu0 %v312
    %474 = vmatpush1.msra.mxu0 %v311
    %475 = vmatprep.subr.mxu0 %v317
    %476 = vmatpush1.msra.mxu0 %v316
    %477 = vmatprep.subr.mxu0 %v322
    %478 = vmatpush1.msra.mxu0 %v321
    %479 = vmatprep.subr.mxu0 %v327
    %480 = vmatpush1.msra.mxu0 %v326
    %481 = vmatprep.subr.mxu0 %v332
    %482 = vmatpush1.msra.mxu0 %v331
    %483 = vmatprep.subr.mxu0 %v337
    %484 = vmatpush1.msra.mxu0 %v336
    %485 = vmatprep.mubr.f32.mxu0 %v347
    %486 = vmatmul.mubr.f32.gmra.mrb[0].mxu0 %v346
    %v487 = vpop.f32.mrb[0].mxu0
    %v488 = vadd.f32 0.0, %v487
    %v489 = vpop.f32.mrb[0].mxu0
    %v490 = vadd.f32 0.0, %v489
    %491 = vdwg.mxu0
    %492 = vmatprep.subr.mxu0 0.0
    %493 = vmatpush1.msra.mxu0 %v183
    %494 = vmatprep.subr.mxu0 0.0
    %495 = vmatpush1.msra.mxu0 %v188
    %496 = vmatprep.subr.mxu0 0.0
    %497 = vmatpush1.msra.mxu0 %v193
    %498 = vmatprep.subr.mxu0 0.0
    %499 = vmatpush1.msra.mxu0 %v198
    %500 = vmatprep.subr.mxu0 0.0
    %501 = vmatpush1.msra.mxu0 %v203
    %502 = vmatprep.subr.mxu0 0.0
    %503 = vmatpush1.msra.mxu0 %v208
    %504 = vmatprep.subr.mxu0 0.0
    %505 = vmatpush1.msra.mxu0 %v213
    %506 = vmatprep.subr.mxu0 0.0
    %507 = vmatpush1.msra.mxu0 %v218
    %508 = vmatprep.subr.mxu0 0.0
    %509 = vmatpush1.msra.mxu0 %v223
    %510 = vmatprep.subr.mxu0 0.0
    %511 = vmatpush1.msra.mxu0 %v228
    %512 = vmatprep.subr.mxu0 0.0
    %513 = vmatpush1.msra.mxu0 %v233
    %514 = vmatprep.subr.mxu0 0.0
    %515 = vmatpush1.msra.mxu0 %v238
    %516 = vmatprep.subr.mxu0 0.0
    %517 = vmatpush1.msra.mxu0 %v243
    %518 = vmatprep.subr.mxu0 0.0
    %519 = vmatpush1.msra.mxu0 %v248
    %520 = vmatprep.subr.mxu0 0.0
    %521 = vmatpush1.msra.mxu0 %v253
    %522 = vmatprep.subr.mxu0 0.0
    %523 = vmatpush1.msra.mxu0 %v258
    %524 = vmatprep.subr.mxu0 0.0
    %525 = vmatpush1.msra.mxu0 %v263
    %526 = vmatprep.subr.mxu0 0.0
    %527 = vmatpush1.msra.mxu0 %v268
    %528 = vmatprep.subr.mxu0 0.0
    %529 = vmatpush1.msra.mxu0 %v273
    %530 = vmatprep.subr.mxu0 0.0
    %531 = vmatpush1.msra.mxu0 %v278
    %532 = vmatprep.subr.mxu0 0.0
    %533 = vmatpush1.msra.mxu0 %v283
    %534 = vmatprep.subr.mxu0 0.0
    %535 = vmatpush1.msra.mxu0 %v288
    %536 = vmatprep.subr.mxu0 0.0
    %537 = vmatpush1.msra.mxu0 %v293
    %538 = vmatprep.subr.mxu0 0.0
    %539 = vmatpush1.msra.mxu0 %v298
    %540 = vmatprep.subr.mxu0 0.0
    %541 = vmatpush1.msra.mxu0 %v303
    %542 = vmatprep.subr.mxu0 0.0
    %543 = vmatpush1.msra.mxu0 %v308
    %544 = vmatprep.subr.mxu0 0.0
    %545 = vmatpush1.msra.mxu0 %v313
    %546 = vmatprep.subr.mxu0 0.0
    %547 = vmatpush1.msra.mxu0 %v318
    %548 = vmatprep.subr.mxu0 0.0
    %549 = vmatpush1.msra.mxu0 %v323
    %550 = vmatprep.subr.mxu0 0.0
    %551 = vmatpush1.msra.mxu0 %v328
    %552 = vmatprep.subr.mxu0 0.0
    %553 = vmatpush1.msra.mxu0 %v333
    %554 = vmatprep.subr.mxu0 0.0
    %555 = vmatpush1.msra.mxu0 %v338
    %556 = vmatprep.mubr.f32.mxu0 %v347
    %557 = vmatmul.mubr.f32.gmra.mrb[0].mxu0 %v346
    %v558 = vpop.f32.mrb[0].mxu0
    %v559 = vadd.f32 0.0, %v558
    %v560 = vpop.f32.mrb[0].mxu0
    %561 = vdwg.mxu0
    %v562 = vld [vmem:[%s5] sm:$0x1]
    %v563 = vld [vmem:[%s5 + $0x6] sm:$0x1]
    %v564 = vld [vmem:[#allocation3] sm:$0xff]
    %v565 = vld [vmem:[#allocation3 + $0x8] sm:$0xff]
    %v567 = vlaneseq
    %v568 = vshrl.u32 %v567, 7
    %v569 = vsub.s32 0, %v568
    %v570 = vrot.slane %v562, %v569
    %v572 = vadd.f32 %v417, %v570
    %v575 = vunpack.c.l.s4 1966171168
    %v576 = vunpack.c.0.s8 %v575
    %v577 = vlaneseq
    %v578 = vshrl.u32 %v577, 7
    %v579 = vsub.s32 %v576, %v578
    %v580 = vrot.slane %v572, %v579
    %v581 = vcombine.high %v580, %v580
    %v583 = vunpack.c.l.s4 1966171168
    %v584 = vunpack.c.0.s8 %v583
    %v585 = vlaneseq
    %v586 = vshrl.u32 %v585, 7
    %v587 = vsub.s32 %v584, %v586
    %v588 = vrot.slane %v580, %v587
    %v590 = vunpack.c.l.s4 1966171168
    %v591 = vunpack.c.0.s8 %v590
    %v592 = vlaneseq
    %v593 = vshrl.u32 %v592, 7
    %v594 = vsub.s32 %v591, %v593
    %v595 = vrot.slane %v581, %v594
    %v596 = vlaneseq
    %v597 = vshrl.u32 %v596, 7
    %v598 = vsub.s32 0, %v597
    %v599 = vrot.slane %v588, %v598
    %v600 = vlaneseq
    %v601 = vshrl.u32 %v600, 7
    %v602 = vsub.s32 0, %v601
    %v603 = vrot.slane %v595, %v602
    %v606 = vadd.f32 %v564, %v599
    %v607 = vadd.f32 %v565, %v603
    %v608 = vtanh.pop %v606
    %v609 = vtanh.pop %v607
    %v611 = vlaneseq
    %v612 = vshrl.u32 %v611, 7
    %v613 = vsub.s32 0, %v612
    %v614 = vrot.slane %v563, %v613
    %v616 = vmul.f32 %v608, %v614
    %v617 = vmul.f32 %v609, %v614
    %vm618 = vcmask 261120
    %v619 = vsel %vm618, %v616, 0.0
    %620 = vadd.xlane.f32.xlu0 %v619
    %v621 = vpop.xlane.xlu0 %620
    %v622 = vsel %vm618, %v617, 0.0
    %623 = vadd.xlane.f32.xlu0 %v622
    %v624 = vpop.xlane.xlu0 %623
    %v625 = vlaneseq
    %v626 = vand.u32 %v625, 127
    %v627 = vld [vmem:[%s2 + $0x4] sm:$0x3]
    %v628 = vcvt.f32.s32.to.zero.pseudo %v627
    %629 = vset.pattern.permute.xlu0 0
    %630 = vperm.xlu0 %629, %v628
    %v631 = vpop.permute.xlu0 %630
    %v633 = vunpack.c.l.s4 269488144
    %v634 = vunpack.c.0.s8 %v633
    %v635 = vlaneseq
    %v636 = vshrl.u32 %v635, 7
    %v637 = vsub.s32 %v634, %v636
    %v638 = vrot.slane %v631, %v637
    %vm639 = vcmp.lt.s32.totalorder %v626, %v638
    %v642 = vlaneseq
    %v643 = vshrl.u32 %v642, 7
    %v644 = vsub.s32 %v626, %v643
    %v645 = vrot.slane %v621, %v644
    %v646 = vlaneseq
    %v647 = vshrl.u32 %v646, 7
    %v648 = vsub.s32 %v626, %v647
    %v649 = vrot.slane %v624, %v648
    %vm650 = vcmask 1041409
    %v651 = vsel %vm650, %v649, %v645
    %v653 = vsel %vm639, %v651, -inf
    %vm654 = vcmask 58368
    %v655 = vsel %vm654, %v653, -inf
    %656 = vmax.xlane.f32.xlu0 %v655
    %v657 = vpop.xlane.xlu0 %656
    %v658 = vsub.f32 %v653, %v657
    %v659 = vmul.f32 %v658, 1.442695
    %v660 = vpow.pop %v659
    %v661 = vsel %vm654, %v660, 0.0
    %662 = vadd.xlane.f32.xlu0 %v661
    %v663 = vpop.xlane.xlu0 %662
    %v664 = vrcp.pop %v663
    %v665 = vmul.f32 %v660, %v664
    %v668 = vunpack.c.l.s4 1966171168
    %v669 = vunpack.c.0.s8 %v668
    %v670 = vlaneseq
    %v671 = vshrl.u32 %v670, 7
    %v672 = vsub.s32 %v669, %v671
    %v673 = vrot.slane %v665, %v672
    %v674 = vcombine.high %v673, %v673
    %v676 = vunpack.c.l.s4 1966171168
    %v677 = vunpack.c.0.s8 %v676
    %v678 = vlaneseq
    %v679 = vshrl.u32 %v678, 7
    %v680 = vsub.s32 %v677, %v679
    %v681 = vrot.slane %v673, %v680
    %v683 = vunpack.c.l.s4 1966171168
    %v684 = vunpack.c.0.s8 %v683
    %v685 = vlaneseq
    %v686 = vshrl.u32 %v685, 7
    %v687 = vsub.s32 %v684, %v686
    %v688 = vrot.slane %v674, %v687
    %v689 = vld [vmem:[#allocation7] sm:$0xff]
    %v690 = vld [vmem:[#allocation7 + $0x8] sm:$0xff]
    %vm691 = vcmask 64512
    %v692 = vsel %vm691, %v681, 0
    %694 = vmatprep.subr.mxu0 0.0
    %695 = vmatpush1.msra.mxu0 %v689
    %696 = vmatprep.subr.mxu0 0.0
    %697 = vmatpush1.msra.mxu0 0.0
    %698 = vmatprep.subr.mxu0 0.0
    %699 = vmatpush1.msra.mxu0 0.0
    %700 = vmatprep.subr.mxu0 0.0
    %701 = vmatpush1.msra.mxu0 0.0
    %702 = vmatprep.subr.mxu0 0.0
    %703 = vmatpush1.msra.mxu0 0.0
    %704 = vmatprep.subr.mxu0 0.0
    %705 = vmatpush1.msra.mxu0 0.0
    %706 = vmatprep.subr.mxu0 0.0
    %707 = vmatpush1.msra.mxu0 0.0
    %708 = vmatprep.subr.mxu0 0.0
    %709 = vmatpush1.msra.mxu0 0.0
    %710 = vmatprep.subr.mxu0 0.0
    %711 = vmatpush1.msra.mxu0 0.0
    %712 = vmatprep.subr.mxu0 0.0
    %713 = vmatpush1.msra.mxu0 0.0
    %714 = vmatprep.subr.mxu0 0.0
    %715 = vmatpush1.msra.mxu0 0.0
    %716 = vmatprep.subr.mxu0 0.0
    %717 = vmatpush1.msra.mxu0 0.0
    %718 = vmatprep.subr.mxu0 0.0
    %719 = vmatpush1.msra.mxu0 0.0
    %720 = vmatprep.subr.mxu0 0.0
    %721 = vmatpush1.msra.mxu0 0.0
    %722 = vmatprep.subr.mxu0 0.0
    %723 = vmatpush1.msra.mxu0 0.0
    %724 = vmatprep.subr.mxu0 0.0
    %725 = vmatpush1.msra.mxu0 0.0
    %726 = vmatprep.subr.mxu0 0.0
    %727 = vmatpush1.msra.mxu0 0.0
    %728 = vmatprep.subr.mxu0 0.0
    %729 = vmatpush1.msra.mxu0 0.0
    %730 = vmatprep.subr.mxu0 0.0
    %731 = vmatpush1.msra.mxu0 0.0
    %732 = vmatprep.subr.mxu0 0.0
    %733 = vmatpush1.msra.mxu0 0.0
    %734 = vmatprep.subr.mxu0 0.0
    %735 = vmatpush1.msra.mxu0 0.0
    %736 = vmatprep.subr.mxu0 0.0
    %737 = vmatpush1.msra.mxu0 0.0
    %738 = vmatprep.subr.mxu0 0.0
    %739 = vmatpush1.msra.mxu0 0.0
    %740 = vmatprep.subr.mxu0 0.0
    %741 = vmatpush1.msra.mxu0 0.0
    %742 = vmatprep.subr.mxu0 0.0
    %743 = vmatpush1.msra.mxu0 0.0
    %744 = vmatprep.subr.mxu0 0.0
    %745 = vmatpush1.msra.mxu0 0.0
    %746 = vmatprep.subr.mxu0 0.0
    %747 = vmatpush1.msra.mxu0 0.0
    %748 = vmatprep.subr.mxu0 0.0
    %749 = vmatpush1.msra.mxu0 0.0
    %750 = vmatprep.subr.mxu0 0.0
    %751 = vmatpush1.msra.mxu0 0.0
    %752 = vmatprep.subr.mxu0 0.0
    %753 = vmatpush1.msra.mxu0 0.0
    %754 = vmatprep.subr.mxu0 0.0
    %755 = vmatpush1.msra.mxu0 0.0
    %756 = vmatprep.subr.mxu0 0.0
    %757 = vmatpush1.msra.mxu0 0.0
    %758 = vmatprep.mubr.f32.mxu0 0.0
    %759 = vmatmul.mubr.f32.gmra.mrb[0].mxu0 %v692
    %v760 = vpop.f32.mrb[0].mxu0
    %v761 = vadd.f32 0.0, %v760
    %v762 = vpop.f32.mrb[0].mxu0
    %763 = vdwg.mxu0
    %v764 = vsel %vm691, %v688, 0
    %766 = vmatprep.subr.mxu0 0.0
    %767 = vmatpush1.msra.mxu0 %v690
    %768 = vmatprep.subr.mxu0 0.0
    %769 = vmatpush1.msra.mxu0 0.0
    %770 = vmatprep.subr.mxu0 0.0
    %771 = vmatpush1.msra.mxu0 0.0
    %772 = vmatprep.subr.mxu0 0.0
    %773 = vmatpush1.msra.mxu0 0.0
    %774 = vmatprep.subr.mxu0 0.0
    %775 = vmatpush1.msra.mxu0 0.0
    %776 = vmatprep.subr.mxu0 0.0
    %777 = vmatpush1.msra.mxu0 0.0
    %778 = vmatprep.subr.mxu0 0.0
    %779 = vmatpush1.msra.mxu0 0.0
    %780 = vmatprep.subr.mxu0 0.0
    %781 = vmatpush1.msra.mxu0 0.0
    %782 = vmatprep.subr.mxu0 0.0
    %783 = vmatpush1.msra.mxu0 0.0
    %784 = vmatprep.subr.mxu0 0.0
    %785 = vmatpush1.msra.mxu0 0.0
    %786 = vmatprep.subr.mxu0 0.0
    %787 = vmatpush1.msra.mxu0 0.0
    %788 = vmatprep.subr.mxu0 0.0
    %789 = vmatpush1.msra.mxu0 0.0
    %790 = vmatprep.subr.mxu0 0.0
    %791 = vmatpush1.msra.mxu0 0.0
    %792 = vmatprep.subr.mxu0 0.0
    %793 = vmatpush1.msra.mxu0 0.0
    %794 = vmatprep.subr.mxu0 0.0
    %795 = vmatpush1.msra.mxu0 0.0
    %796 = vmatprep.subr.mxu0 0.0
    %797 = vmatpush1.msra.mxu0 0.0
    %798 = vmatprep.subr.mxu0 0.0
    %799 = vmatpush1.msra.mxu0 0.0
    %800 = vmatprep.subr.mxu0 0.0
    %801 = vmatpush1.msra.mxu0 0.0
    %802 = vmatprep.subr.mxu0 0.0
    %803 = vmatpush1.msra.mxu0 0.0
    %804 = vmatprep.subr.mxu0 0.0
    %805 = vmatpush1.msra.mxu0 0.0
    %806 = vmatprep.subr.mxu0 0.0
    %807 = vmatpush1.msra.mxu0 0.0
    %808 = vmatprep.subr.mxu0 0.0
    %809 = vmatpush1.msra.mxu0 0.0
    %810 = vmatprep.subr.mxu0 0.0
    %811 = vmatpush1.msra.mxu0 0.0
    %812 = vmatprep.subr.mxu0 0.0
    %813 = vmatpush1.msra.mxu0 0.0
    %814 = vmatprep.subr.mxu0 0.0
    %815 = vmatpush1.msra.mxu0 0.0
    %816 = vmatprep.subr.mxu0 0.0
    %817 = vmatpush1.msra.mxu0 0.0
    %818 = vmatprep.subr.mxu0 0.0
    %819 = vmatpush1.msra.mxu0 0.0
    %820 = vmatprep.subr.mxu0 0.0
    %821 = vmatpush1.msra.mxu0 0.0
    %822 = vmatprep.subr.mxu0 0.0
    %823 = vmatpush1.msra.mxu0 0.0
    %824 = vmatprep.subr.mxu0 0.0
    %825 = vmatpush1.msra.mxu0 0.0
    %826 = vmatprep.subr.mxu0 0.0
    %827 = vmatpush1.msra.mxu0 0.0
    %828 = vmatprep.subr.mxu0 0.0
    %829 = vmatpush1.msra.mxu0 0.0
    %830 = vmatprep.mubr.f32.mxu0 0.0
    %831 = vmatmul.mubr.f32.gmra.mrb[0].mxu0 %v764
    %v832 = vpop.f32.mrb[0].mxu0
    %v833 = vadd.f32 0.0, %v832
    %v834 = vpop.f32.mrb[0].mxu0
    %835 = vdwg.mxu0
    %v836 = vld [vmem:[#allocation10 + $0x8] sm:$0xff]
    %v837 = vld [vmem:[#allocation10 + $0x10] sm:$0xff]
    %v838 = vld [vmem:[#allocation10 + $0x18] sm:$0xff]
    %v839 = vld [vmem:[#allocation10 + $0x20] sm:$0xff]
    %v840 = vld [vmem:[#allocation10 + $0x38] sm:$0xff]
    %v841 = vld [vmem:[#allocation10 + $0x40] sm:$0xff]
    %v842 = vld [vmem:[#allocation10 + $0x48] sm:$0xff]
    %v843 = vld [vmem:[#allocation10 + $0x50] sm:$0xff]
    %v844 = vld [vmem:[#allocation10 + $0x68] sm:$0xff]
    %v845 = vld [vmem:[#allocation10 + $0x70] sm:$0xff]
    %v846 = vld [vmem:[#allocation10 + $0x78] sm:$0xff]
    %v847 = vld [vmem:[#allocation10 + $0x80] sm:$0xff]
    %v848 = vld [vmem:[#allocation10 + $0x98] sm:$0xff]
    %v849 = vld [vmem:[#allocation10 + $0xa0] sm:$0xff]
    %v850 = vld [vmem:[#allocation10 + $0xa8] sm:$0xff]
    %v851 = vld [vmem:[#allocation10 + $0xb0] sm:$0xff]
    %v854 = vrot.slane %v833, 7
    %v855 = vsel %vm650, %v854, %v761
    %v856 = vsel %vm618, %v855, 0
    %858 = vmatprep.subr.mxu0 %v837
    %859 = vmatpush1.msra.mxu0 %v836
    %860 = vmatprep.subr.mxu0 %v841
    %861 = vmatpush1.msra.mxu0 %v840
    %862 = vmatprep.subr.mxu0 %v845
    %863 = vmatpush1.msra.mxu0 %v844
    %864 = vmatprep.subr.mxu0 %v849
    %865 = vmatpush1.msra.mxu0 %v848
    %866 = vmatprep.subr.mxu0 0.0
    %867 = vmatpush1.msra.mxu0 0.0
    %868 = vmatprep.subr.mxu0 0.0
    %869 = vmatpush1.msra.mxu0 0.0
    %870 = vmatprep.subr.mxu0 0.0
    %871 = vmatpush1.msra.mxu0 0.0
    %872 = vmatprep.subr.mxu0 0.0
    %873 = vmatpush1.msra.mxu0 0.0
    %874 = vmatprep.subr.mxu0 0.0
    %875 = vmatpush1.msra.mxu0 0.0
    %876 = vmatprep.subr.mxu0 0.0
    %877 = vmatpush1.msra.mxu0 0.0
    %878 = vmatprep.subr.mxu0 0.0
    %879 = vmatpush1.msra.mxu0 0.0
    %880 = vmatprep.subr.mxu0 0.0
    %881 = vmatpush1.msra.mxu0 0.0
    %882 = vmatprep.subr.mxu0 0.0
    %883 = vmatpush1.msra.mxu0 0.0
    %884 = vmatprep.subr.mxu0 0.0
    %885 = vmatpush1.msra.mxu0 0.0
    %886 = vmatprep.subr.mxu0 0.0
    %887 = vmatpush1.msra.mxu0 0.0
    %888 = vmatprep.subr.mxu0 0.0
    %889 = vmatpush1.msra.mxu0 0.0
    %890 = vmatprep.subr.mxu0 0.0
    %891 = vmatpush1.msra.mxu0 0.0
    %892 = vmatprep.subr.mxu0 0.0
    %893 = vmatpush1.msra.mxu0 0.0
    %894 = vmatprep.subr.mxu0 0.0
    %895 = vmatpush1.msra.mxu0 0.0
    %896 = vmatprep.subr.mxu0 0.0
    %897 = vmatpush1.msra.mxu0 0.0
    %898 = vmatprep.subr.mxu0 0.0
    %899 = vmatpush1.msra.mxu0 0.0
    %900 = vmatprep.subr.mxu0 0.0
    %901 = vmatpush1.msra.mxu0 0.0
    %902 = vmatprep.subr.mxu0 0.0
    %903 = vmatpush1.msra.mxu0 0.0
    %904 = vmatprep.subr.mxu0 0.0
    %905 = vmatpush1.msra.mxu0 0.0
    %906 = vmatprep.subr.mxu0 0.0
    %907 = vmatpush1.msra.mxu0 0.0
    %908 = vmatprep.subr.mxu0 0.0
    %909 = vmatpush1.msra.mxu0 0.0
    %910 = vmatprep.subr.mxu0 0.0
    %911 = vmatpush1.msra.mxu0 0.0
    %912 = vmatprep.subr.mxu0 0.0
    %913 = vmatpush1.msra.mxu0 0.0
    %914 = vmatprep.subr.mxu0 0.0
    %915 = vmatpush1.msra.mxu0 0.0
    %916 = vmatprep.subr.mxu0 0.0
    %917 = vmatpush1.msra.mxu0 0.0
    %918 = vmatprep.subr.mxu0 0.0
    %919 = vmatpush1.msra.mxu0 0.0
    %920 = vmatprep.subr.mxu0 0.0
    %921 = vmatpush1.msra.mxu0 0.0
    %922 = vmatprep.mubr.f32.mxu0 0.0
    %923 = vmatmul.mubr.f32.gmra.mrb[0].mxu0 %v856
    %v924 = vpop.f32.mrb[0].mxu0
    %v925 = vadd.f32 0.0, %v924
    %v926 = vpop.f32.mrb[0].mxu0
    %v927 = vadd.f32 0.0, %v926
    %928 = vdwg.mxu0
    %929 = vmatprep.subr.mxu0 %v839
    %930 = vmatpush1.msra.mxu0 %v838
    %931 = vmatprep.subr.mxu0 %v843
    %932 = vmatpush1.msra.mxu0 %v842
    %933 = vmatprep.subr.mxu0 %v847
    %934 = vmatpush1.msra.mxu0 %v846
    %935 = vmatprep.subr.mxu0 %v851
    %936 = vmatpush1.msra.mxu0 %v850
    %937 = vmatprep.subr.mxu0 0.0
    %938 = vmatpush1.msra.mxu0 0.0
    %939 = vmatprep.subr.mxu0 0.0
    %940 = vmatpush1.msra.mxu0 0.0
    %941 = vmatprep.subr.mxu0 0.0
    %942 = vmatpush1.msra.mxu0 0.0
    %943 = vmatprep.subr.mxu0 0.0
    %944 = vmatpush1.msra.mxu0 0.0
    %945 = vmatprep.subr.mxu0 0.0
    %946 = vmatpush1.msra.mxu0 0.0
    %947 = vmatprep.subr.mxu0 0.0
    %948 = vmatpush1.msra.mxu0 0.0
    %949 = vmatprep.subr.mxu0 0.0
    %950 = vmatpush1.msra.mxu0 0.0
    %951 = vmatprep.subr.mxu0 0.0
    %952 = vmatpush1.msra.mxu0 0.0
    %953 = vmatprep.subr.mxu0 0.0
    %954 = vmatpush1.msra.mxu0 0.0
    %955 = vmatprep.subr.mxu0 0.0
    %956 = vmatpush1.msra.mxu0 0.0
    %957 = vmatprep.subr.mxu0 0.0
    %958 = vmatpush1.msra.mxu0 0.0
    %959 = vmatprep.subr.mxu0 0.0
    %960 = vmatpush1.msra.mxu0 0.0
    %961 = vmatprep.subr.mxu0 0.0
    %962 = vmatpush1.msra.mxu0 0.0
    %963 = vmatprep.subr.mxu0 0.0
    %964 = vmatpush1.msra.mxu0 0.0
    %965 = vmatprep.subr.mxu0 0.0
    %966 = vmatpush1.msra.mxu0 0.0
    %967 = vmatprep.subr.mxu0 0.0
    %968 = vmatpush1.msra.mxu0 0.0
    %969 = vmatprep.subr.mxu0 0.0
    %970 = vmatpush1.msra.mxu0 0.0
    %971 = vmatprep.subr.mxu0 0.0
    %972 = vmatpush1.msra.mxu0 0.0
    %973 = vmatprep.subr.mxu0 0.0
    %974 = vmatpush1.msra.mxu0 0.0
    %975 = vmatprep.subr.mxu0 0.0
    %976 = vmatpush1.msra.mxu0 0.0
    %977 = vmatprep.subr.mxu0 0.0
    %978 = vmatpush1.msra.mxu0 0.0
    %979 = vmatprep.subr.mxu0 0.0
    %980 = vmatpush1.msra.mxu0 0.0
    %981 = vmatprep.subr.mxu0 0.0
    %982 = vmatpush1.msra.mxu0 0.0
    %983 = vmatprep.subr.mxu0 0.0
    %984 = vmatpush1.msra.mxu0 0.0
    %985 = vmatprep.subr.mxu0 0.0
    %986 = vmatpush1.msra.mxu0 0.0
    %987 = vmatprep.subr.mxu0 0.0
    %988 = vmatpush1.msra.mxu0 0.0
    %989 = vmatprep.subr.mxu0 0.0
    %990 = vmatpush1.msra.mxu0 0.0
    %991 = vmatprep.subr.mxu0 0.0
    %992 = vmatpush1.msra.mxu0 0.0
    %993 = vmatprep.mubr.f32.mxu0 0.0
    %994 = vmatmul.mubr.f32.gmra.mrb[0].mxu0 %v856
    %v995 = vpop.f32.mrb[0].mxu0
    %v996 = vadd.f32 0.0, %v995
    %v997 = vpop.f32.mrb[0].mxu0
    %v998 = vadd.f32 0.0, %v997
    %999 = vdwg.mxu0
    %v1000 = vadd.f32 %v419, %v925
    %v1001 = vadd.f32 %v488, %v927
    %v1002 = vadd.f32 %v490, %v996
    %v1003 = vadd.f32 %v559, %v998
    %v1004 = vld [vmem:[%s5 + $0x1] sm:$0xf]
    %v1006 = vlaneseq
    %v1007 = vshrl.u32 %v1006, 7
    %v1008 = vsub.s32 0, %v1007
    %v1009 = vrot.slane %v1004, %v1008
    %v1010 = vlaneseq
    %v1011 = vshrl.u32 %v1010, 7
    %v1012 = vsub.s32 1, %v1011
    %v1013 = vrot.slane %v1004, %v1012
    %v1014 = vlaneseq
    %v1015 = vshrl.u32 %v1014, 7
    %v1016 = vsub.s32 2, %v1015
    %v1017 = vrot.slane %v1004, %v1016
    %v1018 = vlaneseq
    %v1019 = vshrl.u32 %v1018, 7
    %v1020 = vsub.s32 3, %v1019
    %v1021 = vrot.slane %v1004, %v1020
    %v1026 = vadd.f32 %v1000, %v1009
    %v1027 = vadd.f32 %v1001, %v1013
    %v1028 = vadd.f32 %v1002, %v1017
    %v1029 = vadd.f32 %v1003, %v1021
    %v1030 = vxor.u32 %v1026, 2147483648
    %v1031 = vmul.f32 %v1030, 1.442695
    %v1032 = vpow.pop %v1031
    %v1033 = vadd.f32 %v1032, 1.0
    %v1034 = vrcp.pop %v1033
    %v1035 = vmul.f32 1.0, %v1034
    %v1036 = vxor.u32 %v1027, 2147483648
    %v1037 = vmul.f32 %v1036, 1.442695
    %v1038 = vpow.pop %v1037
    %v1039 = vadd.f32 %v1038, 1.0
    %v1040 = vrcp.pop %v1039
    %v1041 = vmul.f32 1.0, %v1040
    %v1042 = vtanh.pop %v1028
    %v1043 = vxor.u32 %v1029, 2147483648
    %v1044 = vmul.f32 %v1043, 1.442695
    %v1045 = vpow.pop %v1044
    %v1046 = vadd.f32 %v1045, 1.0
    %v1047 = vrcp.pop %v1046
    %v1048 = vmul.f32 1.0, %v1047
    %v1049 = vmul.f32 %v1041, %v178
    %v1050 = vmul.f32 %v1035, %v1042
    %v1051 = vadd.f32 %v1049, %v1050
    %v1052 = vtanh.pop %v1051
    %v1053 = vmul.f32 %v1048, %v1052
    %1054 = vst [vmem:[#allocation2] sm:$0x3] %v1053
    %1055 = vst [vmem:[#allocation2 + $0x4] sm:$0x3] %v1051
    %v1056 = vld [vmem:[#allocation10 + $0x28] sm:$0xff]
    %v1057 = vld [vmem:[#allocation10 + $0x58] sm:$0xff]
    %v1058 = vld [vmem:[#allocation10 + $0x88] sm:$0xff]
    %v1059 = vld [vmem:[#allocation10 + $0xb8] sm:$0xff]
    %v1060 = vld [vmem:[#allocation10 + $0xe8] sm:$0xff]
    %v1061 = vld [vmem:[#allocation10 + $0x118] sm:$0xff]
    %v1062 = vld [vmem:[#allocation10 + $0x148] sm:$0xff]
    %v1063 = vld [vmem:[#allocation10 + $0x178] sm:$0xff]
    %v1064 = vld [vmem:[#allocation10 + $0x1a8] sm:$0xff]
    %v1065 = vld [vmem:[#allocation10 + $0x1d8] sm:$0xff]
    %v1066 = vld [vmem:[#allocation10 + $0x208] sm:$0xff]
    %v1067 = vld [vmem:[#allocation10 + $0x238] sm:$0xff]
    %v1068 = vld [vmem:[#allocation10 + $0x268] sm:$0xff]
    %v1069 = vld [vmem:[#allocation10 + $0x298] sm:$0xff]
    %v1070 = vld [vmem:[#allocation10 + $0x2c8] sm:$0xff]
    %v1071 = vld [vmem:[#allocation10 + $0x2f8] sm:$0xff]
    %v1072 = vld [vmem:[%s5 + $0x5] sm:$0x1]
    %v1074 = vlaneseq
    %v1075 = vshrl.u32 %v1074, 7
    %v1076 = vsub.s32 0, %v1075
    %v1077 = vrot.slane %v1072, %v1076
    %1079 = vmatprep.subr.mxu0 0.0
    %1080 = vmatpush1.msra.mxu0 %v1056
    %1081 = vmatprep.subr.mxu0 0.0
    %1082 = vmatpush1.msra.mxu0 %v1057
    %1083 = vmatprep.subr.mxu0 0.0
    %1084 = vmatpush1.msra.mxu0 %v1058
    %1085 = vmatprep.subr.mxu0 0.0
    %1086 = vmatpush1.msra.mxu0 %v1059
    %1087 = vmatprep.subr.mxu0 0.0
    %1088 = vmatpush1.msra.mxu0 %v1060
    %1089 = vmatprep.subr.mxu0 0.0
    %1090 = vmatpush1.msra.mxu0 %v1061
    %1091 = vmatprep.subr.mxu0 0.0
    %1092 = vmatpush1.msra.mxu0 %v1062
    %1093 = vmatprep.subr.mxu0 0.0
    %1094 = vmatpush1.msra.mxu0 %v1063
    %1095 = vmatprep.subr.mxu0 0.0
    %1096 = vmatpush1.msra.mxu0 %v1064
    %1097 = vmatprep.subr.mxu0 0.0
    %1098 = vmatpush1.msra.mxu0 %v1065
    %1099 = vmatprep.subr.mxu0 0.0
    %1100 = vmatpush1.msra.mxu0 %v1066
    %1101 = vmatprep.subr.mxu0 0.0
    %1102 = vmatpush1.msra.mxu0 %v1067
    %1103 = vmatprep.subr.mxu0 0.0
    %1104 = vmatpush1.msra.mxu0 %v1068
    %1105 = vmatprep.subr.mxu0 0.0
    %1106 = vmatpush1.msra.mxu0 %v1069
    %1107 = vmatprep.subr.mxu0 0.0
    %1108 = vmatpush1.msra.mxu0 %v1070
    %1109 = vmatprep.subr.mxu0 0.0
    %1110 = vmatpush1.msra.mxu0 %v1071
    %1111 = vmatprep.subr.mxu0 0.0
    %1112 = vmatpush1.msra.mxu0 0.0
    %1113 = vmatprep.subr.mxu0 0.0
    %1114 = vmatpush1.msra.mxu0 0.0
    %1115 = vmatprep.subr.mxu0 0.0
    %1116 = vmatpush1.msra.mxu0 0.0
    %1117 = vmatprep.subr.mxu0 0.0
    %1118 = vmatpush1.msra.mxu0 0.0
    %1119 = vmatprep.subr.mxu0 0.0
    %1120 = vmatpush1.msra.mxu0 0.0
    %1121 = vmatprep.subr.mxu0 0.0
    %1122 = vmatpush1.msra.mxu0 0.0
    %1123 = vmatprep.subr.mxu0 0.0
    %1124 = vmatpush1.msra.mxu0 0.0
    %1125 = vmatprep.subr.mxu0 0.0
    %1126 = vmatpush1.msra.mxu0 0.0
    %1127 = vmatprep.subr.mxu0 0.0
    %1128 = vmatpush1.msra.mxu0 0.0
    %1129 = vmatprep.subr.mxu0 0.0
    %1130 = vmatpush1.msra.mxu0 0.0
    %1131 = vmatprep.subr.mxu0 0.0
    %1132 = vmatpush1.msra.mxu0 0.0
    %1133 = vmatprep.subr.mxu0 0.0
    %1134 = vmatpush1.msra.mxu0 0.0
    %1135 = vmatprep.subr.mxu0 0.0
    %1136 = vmatpush1.msra.mxu0 0.0
    %1137 = vmatprep.subr.mxu0 0.0
    %1138 = vmatpush1.msra.mxu0 0.0
    %1139 = vmatprep.subr.mxu0 0.0
    %1140 = vmatpush1.msra.mxu0 0.0
    %1141 = vmatprep.subr.mxu0 0.0
    %1142 = vmatpush1.msra.mxu0 0.0
    %1143 = vmatprep.mubr.f32.mxu0 0.0
    %1144 = vmatmul.mubr.f32.gmra.mrb[0].mxu0 %v1053
    %v1145 = vpop.f32.mrb[0].mxu0
    %v1146 = vadd.f32 %v1077, %v1145
    %v1147 = vpop.f32.mrb[0].mxu0
    %1148 = vdwg.mxu0
    %vm1149 = vcmask 1041408
    %v1150 = vsel %vm1149, %v1146, -inf
    %1151 = vmax.xlane.f32.xlu0 %v1150
    %v1152 = vpop.xlane.xlu0 %1151
    %v1153 = vsub.f32 %v1146, %v1152
    %v1154 = vmul.f32 %v1153, 1.442695
    %v1155 = vpow.pop %v1154
    %v1156 = vsel %vm1149, %v1155, 0.0
    %1157 = vadd.xlane.f32.xlu0 %v1156
    %v1158 = vpop.xlane.xlu0 %1157
    %v1159 = vlog2.pop %v1158
    %v1160 = vmul.f32 %v1159, 0.6931472
    %v1161 = vadd.f32 %v1160, %v1152
    %v1162 = vsub.f32 %v1146, %v1161
    %v1163 = vsel %vm691, %v665, 0.0
    %v1168 = vcombine.low %v1162, %v1053
    %v1169 = vcombine.low %v1051, %v1163
    %v1171 = vunpack.c.l.s4 1983009808
    %v1172 = vunpack.c.0.s8 %v1171
    %v1173 = vlaneseq
    %v1174 = vshrl.u32 %v1173, 7
    %v1175 = vsub.s32 %v1172, %v1174
    %v1176 = vrot.slane %v1168, %v1175
    %v1178 = vunpack.c.l.s4 1983009808
    %v1179 = vunpack.c.0.s8 %v1178
    %v1180 = vlaneseq
    %v1181 = vshrl.u32 %v1180, 7
    %v1182 = vsub.s32 %v1179, %v1181
    %v1183 = vrot.slane %v1169, %v1182
    %v1184 = vcombine.low %v1176, %v1183
    %1186 = vst [vmem:[#allocation12] sm:$0xff] %v1184
    // Predicated region
    $region46: #{tpu_custom_call.1} parent=1 // pred_check
      _
    $region47: #{tpu_custom_call.1} parent=1 // pred_check_branch
      %1188 = sbr.rel (0) target = $region49
    $region48: #{tpu_custom_call.1} parent=1 // pred_region
      %s1190 = ssub.s32 128, 128
      %1191 = vsyncadd [#allocation6], %s1190
      %s1193 = sshll.u32 [#allocation12], 4
      %s1194 = int_to_ptr.vmem [resolvable:$true] %s1193
      %1196 = dma.vmem_to_hbm [thread:$0]  %s1194, 128, %s6, [#allocation6]
    $region49: #{tpu_custom_call.1} parent=1 // pred_fallthru
      _
    // Predicated region
    $region50: #{tpu_custom_call.1} parent=1 // pred_check
      _
    $region51: #{tpu_custom_call.1} parent=1 // pred_check_branch
      %1198 = sbr.rel (0) target = $region53
    $region52: #{tpu_custom_call.1} parent=1 // pred_region
      %1199 = dma.done [#allocation6], 128
    $region53: #{tpu_custom_call.1} parent=1 // pred_fallthru
      _
    %1200 = vsyncpa [#allocation5], 1
    %1201 = vsyncpa [#allocation8], 1
    %1202 = vsyncpa [#allocation11], 1
    %1203 = vsyncpa [#allocation6], 1

</llo_original>
